<compile_context>
chip_gen: v6e
topology: v6e:2x2x1
jax: 0.10.0
libtpu: 0.0.40
codegen_flags: <defaults>
</compile_context>

<pallas_src>
import functools

import jax
import jax.numpy as jnp
from jax.experimental import pallas as pl
from jax.experimental.pallas import tpu as pltpu


def _round_up(x, m):
    return (x + m - 1) // m * m


def _conv_bn_lrelu_kernel(x_ref, w_ref, b_ref, o_ref, *, C, KH, KW, dil, Wp, GL_out):
    """One grid step = one group of NG images, implicit im2col via tap accumulation.

    x_ref: (1, C, GL_in)   bf16  padded, row-flattened, lane-packed group of images
    w_ref: (OC, KH*KW*C)   bf16  conv weight, (kh, kw, c)-major, BN scale folded in
    b_ref: (OC, 1)         f32   folded conv bias + BN shift
    o_ref: (1, OC, GL_out) bf16  stride-1 "wide" conv output over the padded grid
    """
    acc = None
    for kh in range(KH):
        for kw in range(KW):
            t = kh * KW + kw
            off = dil * (kh * Wp + kw)               # static lane shift for this tap
            slab = x_ref[0, :, off:off + GL_out]     # (C, GL_out) shifted view
            part = jnp.dot(w_ref[:, t * C:(t + 1) * C], slab,
                           preferred_element_type=jnp.float32)   # (OC, GL_out) on MXU
            acc = part if acc is None else acc + part
    y = acc + b_ref[...]                                          # f32 bias epilogue
    o_ref[0, :, :] = jnp.where(y >= 0.0, y, 0.1 * y).astype(o_ref.dtype)  # LeakyReLU(0.1)


@functools.partial(jax.jit, static_argnames=("ksize", "padding", "stride", "dilation"))
def conv_bn_leakyrelu(x, weight, conv_bias, gamma, beta, run_mean, run_var,
                      *, ksize, padding=0, stride=1, dilation=1, eps=1e-5):
    """Forward of Conv_BN_LeakyReLU (eval-mode BN).  x: NCHW f32, weight: [OC, C, KH, KW]."""
    N, C, H, W = x.shape
    OC = weight.shape[0]
    KH = KW = ksize
    K = KH * KW * C

    Hp, Wp = H + 2 * padding, W + 2 * padding
    OH1 = Hp - dilation * (KH - 1)            # stride-1 ("wide") output extents
    OW1 = Wp - dilation * (KW - 1)
    OH = (OH1 - 1) // stride + 1              # true output extents (match PyTorch Conv2d)
    OW = (OW1 - 1) // stride + 1

    SEG = _round_up(Hp * Wp, 128)                      # per-image lane segment
    off_max = dilation * ((KH - 1) * Wp + (KW - 1))    # largest tap shift
    TAIL = _round_up(off_max, 128)                     # zero slack: shifted slices stay in-bounds

    # ---- group sizing: lanes per grid step -----------------------------------
    # Double-buffered bf16 in/out + f32 accumulator + tap temporaries kept well under
    # v7x's 64 MiB VMEM; each step gets far more work than the ~0.35us step overhead.
    bytes_per_lane = 2 * (2 * C) + 2 * (2 * OC) + 4 * OC + 4 * C
    max_lanes = max(SEG, (40 * 1024 * 1024 // bytes_per_lane) // 128 * 128)
    target_lanes = min(32 * 1024, max_lanes)
    NG = max(1, min(N, target_lanes // SEG))           # images per grid step
    n_groups = -(-N // NG)
    if n_groups == 1 and N > 1:                        # keep both v7x TensorCores busy
        NG = -(-N // 2)
        n_groups = -(-N // NG)
    N_pad = n_groups * NG
    GL_out = NG * SEG
    GL_in = GL_out + TAIL

    # ---- pack activations: one pad for batch+space, flatten rows, batch -> lanes ----
    # Cast to bf16 up front so the relayout copies below are half-width.
    xp = jnp.pad(x, ((0, N_pad - N), (0, 0),
                     (padding, padding), (padding, padding))).astype(jnp.bfloat16)
    x_flat = jnp.pad(xp.reshape(N_pad, C, Hp * Wp),
                     ((0, 0), (0, 0), (0, SEG - Hp * Wp)))            # (N_pad, C, SEG)
    x_grp = x_flat.reshape(n_groups, NG, C, SEG).transpose(0, 2, 1, 3)
    x_grp = jnp.pad(x_grp.reshape(n_groups, C, GL_out),
                    ((0, 0), (0, 0), (0, TAIL)))                      # (n_groups, C, GL_in)

    # ---- fold BN (eval semantics) into a weight scale and per-channel bias ----------
    scale = gamma / jnp.sqrt(run_var + eps)                               # (OC,)
    bias_eff = ((conv_bias - run_mean) * scale + beta).reshape(OC, 1)     # (OC, 1) f32
    w_flat = weight.transpose(0, 2, 3, 1).reshape(OC, K)                  # (kh, kw, c)-major
    w_scaled = (w_flat * scale[:, None]).astype(jnp.bfloat16)

    kernel = functools.partial(_conv_bn_lrelu_kernel,
                               C=C, KH=KH, KW=KW, dil=dilation, Wp=Wp, GL_out=GL_out)

    # Explicit VMEM budget (v5e default scoped limit is 16 MiB; v7x physical is 64 MiB).
    est = (2 * C * GL_in * 2          # double-buffered bf16 input
           + 2 * OC * GL_out * 2      # double-buffered bf16 output
           + OC * K * 2 + OC * 128 * 4
           + OC * GL_out * 4          # f32 accumulator
           + 2 * C * GL_out * 2)      # tap slab temporaries
    vmem_limit = int(min(48 * 1024 * 1024, max(2 * est, 4 * 1024 * 1024)))

    wide = pl.pallas_call(
        kernel,
        out_shape=jax.ShapeDtypeStruct((n_groups, OC, GL_out), jnp.bfloat16),
        grid_spec=pltpu.PrefetchScalarGridSpec(
            num_scalar_prefetch=0,
            grid=(n_groups,),
            in_specs=[
                pl.BlockSpec((1, C, GL_in), lambda g: (g, 0, 0)),   # per-group activations
                pl.BlockSpec((OC, K), lambda g: (0, 0)),            # resident weight
                pl.BlockSpec((OC, 1), lambda g: (0, 0)),            # resident bias
            ],
            out_specs=pl.BlockSpec((1, OC, GL_out), lambda g: (g, 0, 0)),
        ),
        compiler_params=pltpu.CompilerParams(
            dimension_semantics=("parallel",),
            vmem_limit_bytes=vmem_limit),
    )(x_grp, w_scaled, bias_eff.astype(jnp.float32))

    # (n_groups, OC, NG*SEG) -> (N, OC, OH1, Wp): major-dim regroup + crop (already
    # channel-major, no minor-dim transpose), then drop padded-width cols / apply stride.
    wide = wide.reshape(n_groups, OC, NG, SEG).transpose(0, 2, 1, 3).reshape(N_pad, OC, SEG)
    wide = wide[:N, :, :OH1 * Wp].reshape(N, OC, OH1, Wp)
    out = wide[:, :, ::stride, ::stride][:, :, :OH, :OW]
    return out.astype(jnp.float32)


def _reference(x, weight, conv_bias, gamma, beta, run_mean, run_var,
               *, padding, stride, dilation, eps=1e-5):
    y = jax.lax.conv_general_dilated(
        x, weight,
        window_strides=(stride, stride),
        padding=[(padding, padding), (padding, padding)],
        rhs_dilation=(dilation, dilation),
        dimension_numbers=("NCHW", "OIHW", "NCHW"),
    ) + conv_bias.reshape(1, -1, 1, 1)
    y = (y - run_mean.reshape(1, -1, 1, 1)) / jnp.sqrt(run_var.reshape(1, -1, 1, 1) + eps)
    y = y * gamma.reshape(1, -1, 1, 1) + beta.reshape(1, -1, 1, 1)
    return jnp.where(y >= 0, y, 0.1 * y)


if __name__ == "__main__":
    # Module config: Conv_BN_LeakyReLU(in_channels=4, out_channels=8, ksize=3, padding=1)
    N, C, H, W = 2, 4, 16, 16
    OC, KS, PAD, STRIDE, DIL = 8, 3, 1, 1, 1

    key = jax.random.PRNGKey(0)
    kx, kw, kb, kg, kbeta, km, kv = jax.random.split(key, 7)

    x = jax.random.normal(kx, (N, C, H, W), dtype=jnp.float32)
    weight = jax.random.normal(kw, (OC, C, KS, KS), dtype=jnp.float32) * 0.1
    conv_bias = jax.random.normal(kb, (OC,), dtype=jnp.float32) * 0.1
    gamma = 1.0 + 0.1 * jax.random.normal(kg, (OC,), dtype=jnp.float32)
    beta = 0.1 * jax.random.normal(kbeta, (OC,), dtype=jnp.float32)
    run_mean = 0.1 * jax.random.normal(km, (OC,), dtype=jnp.float32)
    run_var = jnp.abs(1.0 + 0.1 * jax.random.normal(kv, (OC,), dtype=jnp.float32))

    out = conv_bn_leakyrelu(
        x, weight, conv_bias, gamma, beta, run_mean, run_var,
        ksize=KS, padding=PAD, stride=STRIDE, dilation=DIL)
    out = jax.block_until_ready(out)

    ref = _reference(x, weight, conv_bias, gamma, beta, run_mean, run_var,
                     padding=PAD, stride=STRIDE, dilation=DIL)
    assert out.shape == (N, OC, H, W), out.shape
    # bf16 matmul operands + bf16 kernel writeback (f32 accumulation) -> relaxed tolerance.
    assert jnp.allclose(out, ref, atol=3e-2, rtol=3e-2), float(jnp.max(jnp.abs(out - ref)))

    print("KERNEL_OK")
</pallas_src>

<mosaic_0001>
module attributes {stable_mosaic.version = 11 : i64} {
  func.func @_conv_bn_lrelu_kernel(%arg0: i32, %arg1: memref<1x4x512xbf16, #tpu.memory_space<vmem>>, %arg2: memref<8x36xbf16, #tpu.memory_space<vmem>>, %arg3: memref<8x1xf32, #tpu.memory_space<vmem>>, %arg4: memref<1x8x384xbf16, #tpu.memory_space<vmem>>) attributes {dimension_semantics = [#tpu.dimension_semantics<parallel>], iteration_bounds = array<i64: 2>, scalar_prefetch = 0 : i64, scratch_operands = 0 : i64, tpu.core_type = #tpu.core_type<tc>, window_params = [{transform_indices = @transform_0, window_bounds = array<i64: 1, 4, 512>}, {pipeline_mode = #tpu.pipeline_mode<synchronous>, transform_indices = @transform_1, window_bounds = array<i64: 8, 36>}, {pipeline_mode = #tpu.pipeline_mode<synchronous>, transform_indices = @transform_2, window_bounds = array<i64: 8, 1>}, {transform_indices = @transform_3, window_bounds = array<i64: 1, 8, 384>}]} {
    %c0 = arith.constant 0 : index
    %c0_0 = arith.constant 0 : index
    %c0_1 = arith.constant 0 : index
    %0 = vector.load %arg1[%c0, %c0_0, %c0_1] : memref<1x4x512xbf16, #tpu.memory_space<vmem>>, vector<1x4x384xbf16>
    %1 = vector.shape_cast %0 : vector<1x4x384xbf16> to vector<4x384xbf16>
    %c0_2 = arith.constant 0 : index
    %c0_3 = arith.constant 0 : index
    %2 = vector.load %arg2[%c0_2, %c0_3] : memref<8x36xbf16, #tpu.memory_space<vmem>>, vector<8x4xbf16>
    %cst = arith.constant dense<0.000000e+00> : vector<8x384xf32>
    %3 = tpu.matmul %2, %1, %cst {dimension_numbers = #tpu.dot_dimension_numbers<[1], [0], [0], [1], [0, 0, 1, 1], [], []>} : vector<8x4xbf16>, vector<4x384xbf16>, vector<8x384xf32> -> vector<8x384xf32>
    %c0_4 = arith.constant 0 : index
    %c0_5 = arith.constant 0 : index
    %c1 = arith.constant 1 : index
    %4 = vector.load %arg1[%c0_4, %c0_5, %c1] : memref<1x4x512xbf16, #tpu.memory_space<vmem>>, vector<1x4x384xbf16>
    %5 = vector.shape_cast %4 : vector<1x4x384xbf16> to vector<4x384xbf16>
    %c0_6 = arith.constant 0 : index
    %c4 = arith.constant 4 : index
    %6 = vector.load %arg2[%c0_6, %c4] : memref<8x36xbf16, #tpu.memory_space<vmem>>, vector<8x4xbf16>
    %cst_7 = arith.constant dense<0.000000e+00> : vector<8x384xf32>
    %7 = tpu.matmul %6, %5, %cst_7 {dimension_numbers = #tpu.dot_dimension_numbers<[1], [0], [0], [1], [0, 0, 1, 1], [], []>} : vector<8x4xbf16>, vector<4x384xbf16>, vector<8x384xf32> -> vector<8x384xf32>
    %8 = arith.addf %3, %7 : vector<8x384xf32>
    %c0_8 = arith.constant 0 : index
    %c0_9 = arith.constant 0 : index
    %c2 = arith.constant 2 : index
    %9 = vector.load %arg1[%c0_8, %c0_9, %c2] : memref<1x4x512xbf16, #tpu.memory_space<vmem>>, vector<1x4x384xbf16>
    %10 = vector.shape_cast %9 : vector<1x4x384xbf16> to vector<4x384xbf16>
    %c0_10 = arith.constant 0 : index
    %c8 = arith.constant 8 : index
    %11 = vector.load %arg2[%c0_10, %c8] : memref<8x36xbf16, #tpu.memory_space<vmem>>, vector<8x4xbf16>
    %cst_11 = arith.constant dense<0.000000e+00> : vector<8x384xf32>
    %12 = tpu.matmul %11, %10, %cst_11 {dimension_numbers = #tpu.dot_dimension_numbers<[1], [0], [0], [1], [0, 0, 1, 1], [], []>} : vector<8x4xbf16>, vector<4x384xbf16>, vector<8x384xf32> -> vector<8x384xf32>
    %13 = arith.addf %8, %12 : vector<8x384xf32>
    %c0_12 = arith.constant 0 : index
    %c0_13 = arith.constant 0 : index
    %c18 = arith.constant 18 : index
    %14 = vector.load %arg1[%c0_12, %c0_13, %c18] : memref<1x4x512xbf16, #tpu.memory_space<vmem>>, vector<1x4x384xbf16>
    %15 = vector.shape_cast %14 : vector<1x4x384xbf16> to vector<4x384xbf16>
    %c0_14 = arith.constant 0 : index
    %c12 = arith.constant 12 : index
    %16 = vector.load %arg2[%c0_14, %c12] : memref<8x36xbf16, #tpu.memory_space<vmem>>, vector<8x4xbf16>
    %cst_15 = arith.constant dense<0.000000e+00> : vector<8x384xf32>
    %17 = tpu.matmul %16, %15, %cst_15 {dimension_numbers = #tpu.dot_dimension_numbers<[1], [0], [0], [1], [0, 0, 1, 1], [], []>} : vector<8x4xbf16>, vector<4x384xbf16>, vector<8x384xf32> -> vector<8x384xf32>
    %18 = arith.addf %13, %17 : vector<8x384xf32>
    %c0_16 = arith.constant 0 : index
    %c0_17 = arith.constant 0 : index
    %c19 = arith.constant 19 : index
    %19 = vector.load %arg1[%c0_16, %c0_17, %c19] : memref<1x4x512xbf16, #tpu.memory_space<vmem>>, vector<1x4x384xbf16>
    %20 = vector.shape_cast %19 : vector<1x4x384xbf16> to vector<4x384xbf16>
    %c0_18 = arith.constant 0 : index
    %c16 = arith.constant 16 : index
    %21 = vector.load %arg2[%c0_18, %c16] : memref<8x36xbf16, #tpu.memory_space<vmem>>, vector<8x4xbf16>
    %cst_19 = arith.constant dense<0.000000e+00> : vector<8x384xf32>
    %22 = tpu.matmul %21, %20, %cst_19 {dimension_numbers = #tpu.dot_dimension_numbers<[1], [0], [0], [1], [0, 0, 1, 1], [], []>} : vector<8x4xbf16>, vector<4x384xbf16>, vector<8x384xf32> -> vector<8x384xf32>
    %23 = arith.addf %18, %22 : vector<8x384xf32>
    %c0_20 = arith.constant 0 : index
    %c0_21 = arith.constant 0 : index
    %c20 = arith.constant 20 : index
    %24 = vector.load %arg1[%c0_20, %c0_21, %c20] : memref<1x4x512xbf16, #tpu.memory_space<vmem>>, vector<1x4x384xbf16>
    %25 = vector.shape_cast %24 : vector<1x4x384xbf16> to vector<4x384xbf16>
    %c0_22 = arith.constant 0 : index
    %c20_23 = arith.constant 20 : index
    %26 = vector.load %arg2[%c0_22, %c20_23] : memref<8x36xbf16, #tpu.memory_space<vmem>>, vector<8x4xbf16>
    %cst_24 = arith.constant dense<0.000000e+00> : vector<8x384xf32>
    %27 = tpu.matmul %26, %25, %cst_24 {dimension_numbers = #tpu.dot_dimension_numbers<[1], [0], [0], [1], [0, 0, 1, 1], [], []>} : vector<8x4xbf16>, vector<4x384xbf16>, vector<8x384xf32> -> vector<8x384xf32>
    %28 = arith.addf %23, %27 : vector<8x384xf32>
    %c0_25 = arith.constant 0 : index
    %c0_26 = arith.constant 0 : index
    %c36 = arith.constant 36 : index
    %29 = vector.load %arg1[%c0_25, %c0_26, %c36] : memref<1x4x512xbf16, #tpu.memory_space<vmem>>, vector<1x4x384xbf16>
    %30 = vector.shape_cast %29 : vector<1x4x384xbf16> to vector<4x384xbf16>
    %c0_27 = arith.constant 0 : index
    %c24 = arith.constant 24 : index
    %31 = vector.load %arg2[%c0_27, %c24] : memref<8x36xbf16, #tpu.memory_space<vmem>>, vector<8x4xbf16>
    %cst_28 = arith.constant dense<0.000000e+00> : vector<8x384xf32>
    %32 = tpu.matmul %31, %30, %cst_28 {dimension_numbers = #tpu.dot_dimension_numbers<[1], [0], [0], [1], [0, 0, 1, 1], [], []>} : vector<8x4xbf16>, vector<4x384xbf16>, vector<8x384xf32> -> vector<8x384xf32>
    %33 = arith.addf %28, %32 : vector<8x384xf32>
    %c0_29 = arith.constant 0 : index
    %c0_30 = arith.constant 0 : index
    %c37 = arith.constant 37 : index
    %34 = vector.load %arg1[%c0_29, %c0_30, %c37] : memref<1x4x512xbf16, #tpu.memory_space<vmem>>, vector<1x4x384xbf16>
    %35 = vector.shape_cast %34 : vector<1x4x384xbf16> to vector<4x384xbf16>
    %c0_31 = arith.constant 0 : index
    %c28 = arith.constant 28 : index
    %36 = vector.load %arg2[%c0_31, %c28] : memref<8x36xbf16, #tpu.memory_space<vmem>>, vector<8x4xbf16>
    %cst_32 = arith.constant dense<0.000000e+00> : vector<8x384xf32>
    %37 = tpu.matmul %36, %35, %cst_32 {dimension_numbers = #tpu.dot_dimension_numbers<[1], [0], [0], [1], [0, 0, 1, 1], [], []>} : vector<8x4xbf16>, vector<4x384xbf16>, vector<8x384xf32> -> vector<8x384xf32>
    %38 = arith.addf %33, %37 : vector<8x384xf32>
    %c0_33 = arith.constant 0 : index
    %c0_34 = arith.constant 0 : index
    %c38 = arith.constant 38 : index
    %39 = vector.load %arg1[%c0_33, %c0_34, %c38] : memref<1x4x512xbf16, #tpu.memory_space<vmem>>, vector<1x4x384xbf16>
    %40 = vector.shape_cast %39 : vector<1x4x384xbf16> to vector<4x384xbf16>
    %c0_35 = arith.constant 0 : index
    %c32 = arith.constant 32 : index
    %41 = vector.load %arg2[%c0_35, %c32] : memref<8x36xbf16, #tpu.memory_space<vmem>>, vector<8x4xbf16>
    %cst_36 = arith.constant dense<0.000000e+00> : vector<8x384xf32>
    %42 = tpu.matmul %41, %40, %cst_36 {dimension_numbers = #tpu.dot_dimension_numbers<[1], [0], [0], [1], [0, 0, 1, 1], [], []>} : vector<8x4xbf16>, vector<4x384xbf16>, vector<8x384xf32> -> vector<8x384xf32>
    %43 = arith.addf %38, %42 : vector<8x384xf32>
    %c0_37 = arith.constant 0 : index
    %c0_38 = arith.constant 0 : index
    %44 = vector.load %arg3[%c0_37, %c0_38] : memref<8x1xf32, #tpu.memory_space<vmem>>, vector<8x1xf32>
    %45 = vector.broadcast %44 : vector<8x1xf32> to vector<8x384xf32>
    %46 = arith.addf %43, %45 : vector<8x384xf32>
    %cst_39 = arith.constant 0.000000e+00 : f32
    %47 = vector.broadcast %cst_39 : f32 to vector<8x384xf32>
    %48 = arith.cmpf oge, %46, %47 : vector<8x384xf32>
    %cst_40 = arith.constant 1.000000e-01 : f32
    %49 = vector.broadcast %cst_40 : f32 to vector<8x384xf32>
    %50 = arith.mulf %49, %46 : vector<8x384xf32>
    %51 = arith.select %48, %46, %50 : vector<8x384xi1>, vector<8x384xf32>
    %52 = arith.truncf %51 : vector<8x384xf32> to vector<8x384xbf16>
    %c0_41 = arith.constant 0 : index
    %c0_42 = arith.constant 0 : index
    %c0_43 = arith.constant 0 : index
    %53 = vector.load %arg4[%c0_41, %c0_42, %c0_43] : memref<1x8x384xbf16, #tpu.memory_space<vmem>>, vector<1x8x384xbf16>
    %54 = vector.shape_cast %53 : vector<1x8x384xbf16> to vector<8x384xbf16>
    %55 = vector.shape_cast %52 : vector<8x384xbf16> to vector<1x8x384xbf16>
    tpu.vector_store %arg4[%c0_41, %c0_42, %c0_43], %55 {strides = array<i32>} : memref<1x8x384xbf16, #tpu.memory_space<vmem>>, vector<1x8x384xbf16>,
    return
  }
  func.func @transform_0(%arg0: i32) -> (i32, i32, i32) {
    %c0_i32 = arith.constant 0 : i32
    %c0_i32_0 = arith.constant 0 : i32
    %c0_i32_1 = arith.constant 0 : i32
    return %arg0, %c0_i32, %c0_i32_0 : i32, i32, i32
  }
  func.func @transform_1(%arg0: i32) -> (i32, i32) {
    %c0_i32 = arith.constant 0 : i32
    %c0_i32_0 = arith.constant 0 : i32
    %c0_i32_1 = arith.constant 0 : i32
    return %c0_i32, %c0_i32_0 : i32, i32
  }
  func.func @transform_2(%arg0: i32) -> (i32, i32) {
    %c0_i32 = arith.constant 0 : i32
    %c0_i32_0 = arith.constant 0 : i32
    %c0_i32_1 = arith.constant 0 : i32
    return %c0_i32, %c0_i32_0 : i32, i32
  }
  func.func @transform_3(%arg0: i32) -> (i32, i32, i32) {
    %c0_i32 = arith.constant 0 : i32
    %c0_i32_0 = arith.constant 0 : i32
    %c0_i32_1 = arith.constant 0 : i32
    return %arg0, %c0_i32, %c0_i32_0 : i32, i32, i32
  }
}

</mosaic_0001>

<llo_original>
// kernel: conv_bn_leakyrelu.1
$region0: #{conv_bn_leakyrelu.1}
  #allocation0 [shape = 'u32[]', space=smem, size = 0x4, offset = 0x4, fixed_abs, tag = 'smem constant byte address 0x4 - core index']
  #allocation1 [shape = 'u32[144,128]{1,0:T(1,128)}', space=vmem, size = 0x12000, scoped, tag = 'internal scratch']
  %s0 = inlined_call_operand.vmem [shape: bf16[2,4,512], index: 0, kind: input, shape index: {}]
  %s1 = inlined_call_operand.vmem [shape: bf16[8,36], index: 1, kind: input, shape index: {}]
  %s2 = inlined_call_operand.vmem [shape: f32[8,1], index: 2, kind: input, shape index: {}]
  %s3 = inlined_call_operand.vmem [shape: bf16[2,8,384], index: 3, kind: output, shape index: {}]
  %s4 = sld [smem:[#allocation0]]
  $region45: #{conv_bn_leakyrelu.1} parent=0
    _
  %s6 = ssub.s32 1, %s4
  %s7 = scalar_select 0, %s6, %s4
  loop: start=0, step=1, limit=4
  $region2: #{conv_bn_leakyrelu.1} parent=0 // loop_pre_header
    _
  $region3: #{conv_bn_leakyrelu.1} parent=0 // loop_header
    %s9 = sphi 0, %s13
    %p10 = scmp.ge.s32.totalorder %s9, 4
    %s19 = sphi 0, %s21
    %s22 = sphi 0, %s19
    %s23 = sphi 0, %s22
    %s39 = sphi 0, %s23
    %s43 = sphi 0, %s43
    %s45 = sphi 0, %s43
    %s46 = sphi 0, %s45
    %s60 = sphi 0, %s46
    %s64 = sphi 0, %s64
    %s66 = sphi 0, %s64
    %s67 = sphi 0, %s66
    %s81 = sphi 0, %s67
    %s87 = sphi 0, %s89
    %s90 = sphi 0, %s87
    %s91 = sphi 0, %s90
    %s107 = sphi 0, %s91
  $region4: #{conv_bn_leakyrelu.1} parent=0 // loop_header_branch
    %12 = sbr.rel (%p10) target = $region8
  $region5: #{conv_bn_leakyrelu.1} parent=0 // loop_body
    %s14 = ssub.s32 %s9, 1
    %s15 = ssub.s32 %s9, 2
    %s16 = sadd.s32 %s9, 1
    %s17 = ssub.s32 %s9, %s16
    %p18 = scmp.eq.s32.totalorder %s17, 0
    %s20 = sadd.s32 %s19, 1
    %s21 = scalar_select %p18, %s19, %s20
    %p24 = pneg %p18
    %p25 = scmp.eq.s32.totalorder %s9, 1
    %p26 = por %p24, %p25
    %p27 = scmp.ne.s32.totalorder %s19, %s22
    %p28 = scmp.eq.s32.totalorder %s9, 0
    %p29 = por %p27, %p28
    %p30 = scmp.ne.s32.totalorder %s19, %s22
    %p31 = scmp.eq.s32.totalorder %s14, 1
    %p32 = por %p30, %p31
    %p33 = scmp.ne.s32.totalorder %s22, %s23
    %p34 = scmp.eq.s32.totalorder %s14, 0
    %p35 = por %p33, %p34
    %p36 = scmp.ne.s32.totalorder %s22, %s23
    %p37 = scmp.eq.s32.totalorder %s15, 1
    %p38 = por %p36, %p37
    %p40 = scmp.ne.s32.totalorder %s23, %s39
    %p41 = scmp.eq.s32.totalorder %s15, 0
    %p42 = por %p40, %p41
    %s44 = sadd.s32 %s43, 1
    %p47 = scmp.eq.s32.totalorder %s9, 1
    %p48 = scmp.ne.s32.totalorder %s43, %s45
    %p49 = scmp.eq.s32.totalorder %s9, 0
    %p50 = por %p48, %p49
    %p51 = scmp.ne.s32.totalorder %s43, %s45
    %p52 = scmp.eq.s32.totalorder %s14, 1
    %p53 = por %p51, %p52
    %p54 = scmp.ne.s32.totalorder %s45, %s46
    %p55 = scmp.eq.s32.totalorder %s14, 0
    %p56 = por %p54, %p55
    %p57 = scmp.ne.s32.totalorder %s45, %s46
    %p58 = scmp.eq.s32.totalorder %s15, 1
    %p59 = por %p57, %p58
    %p61 = scmp.ne.s32.totalorder %s46, %s60
    %p62 = scmp.eq.s32.totalorder %s15, 0
    %p63 = por %p61, %p62
    %s65 = sadd.s32 %s64, 1
    %p68 = scmp.eq.s32.totalorder %s9, 1
    %p69 = scmp.ne.s32.totalorder %s64, %s66
    %p70 = scmp.eq.s32.totalorder %s9, 0
    %p71 = por %p69, %p70
    %p72 = scmp.ne.s32.totalorder %s64, %s66
    %p73 = scmp.eq.s32.totalorder %s14, 1
    %p74 = por %p72, %p73
    %p75 = scmp.ne.s32.totalorder %s66, %s67
    %p76 = scmp.eq.s32.totalorder %s14, 0
    %p77 = por %p75, %p76
    %p78 = scmp.ne.s32.totalorder %s66, %s67
    %p79 = scmp.eq.s32.totalorder %s15, 1
    %p80 = por %p78, %p79
    %p82 = scmp.ne.s32.totalorder %s67, %s81
    %p83 = scmp.eq.s32.totalorder %s15, 0
    %p84 = por %p82, %p83
    %s85 = ssub.s32 %s9, %s16
    %p86 = scmp.eq.s32.totalorder %s85, 0
    %s88 = sadd.s32 %s87, 1
    %s89 = scalar_select %p86, %s87, %s88
    %p92 = pneg %p86
    %p93 = scmp.eq.s32.totalorder %s9, 1
    %p94 = por %p92, %p93
    %p95 = scmp.ne.s32.totalorder %s87, %s90
    %p96 = scmp.eq.s32.totalorder %s9, 0
    %p97 = por %p95, %p96
    %p98 = scmp.ne.s32.totalorder %s87, %s90
    %p99 = scmp.eq.s32.totalorder %s14, 1
    %p100 = por %p98, %p99
    %p101 = scmp.ne.s32.totalorder %s90, %s91
    %p102 = scmp.eq.s32.totalorder %s14, 0
    %p103 = por %p101, %p102
    %p104 = scmp.ne.s32.totalorder %s90, %s91
    %p105 = scmp.eq.s32.totalorder %s15, 1
    %p106 = por %p104, %p105
    %p108 = scmp.ne.s32.totalorder %s91, %s107
    %p109 = scmp.eq.s32.totalorder %s15, 0
    %p110 = por %p108, %p109
    %p111 = scmp.le.s32.totalorder 1, %s9
    %p112 = scmp.lt.s32.totalorder %s9, 3
    %p113 = pnand %p111, %p112
    %p114 = pneg %p113
    // Predicated region
    $region9: #{conv_bn_leakyrelu.1} parent=5 // pred_check
      _
    $region10: #{conv_bn_leakyrelu.1} parent=5 // pred_check_branch
      %116 = sbr.rel (%p113) target = $region12
    $region11: #{conv_bn_leakyrelu.1} parent=5 // pred_region
      %s117 = ssub.s32 %s9, 1
      // Predicated region
      $region13: #{conv_bn_leakyrelu.1} parent=11 // pred_check
        %p118 = pneg %p56
      $region14: #{conv_bn_leakyrelu.1} parent=11 // pred_check_branch
        %120 = sbr.rel (%p118) target = $region16
      $region15: #{conv_bn_leakyrelu.1} parent=11 // pred_region
        _
      $region16: #{conv_bn_leakyrelu.1} parent=11 // pred_fallthru
        _
      // Predicated region
      $region17: #{conv_bn_leakyrelu.1} parent=11 // pred_check
        %p121 = pneg %p77
      $region18: #{conv_bn_leakyrelu.1} parent=11 // pred_check_branch
        %123 = sbr.rel (%p121) target = $region20
      $region19: #{conv_bn_leakyrelu.1} parent=11 // pred_region
        _
      $region20: #{conv_bn_leakyrelu.1} parent=11 // pred_fallthru
        _
    $region12: #{conv_bn_leakyrelu.1} parent=5 // pred_fallthru
      _
    %p124 = scmp.lt.s32.totalorder %s9, 2
    // Predicated region
    $region21: #{conv_bn_leakyrelu.1} parent=5 // pred_check
      %p125 = pneg %p124
    $region22: #{conv_bn_leakyrelu.1} parent=5 // pred_check_branch
      %127 = sbr.rel (%p125) target = $region24
    $region23: #{conv_bn_leakyrelu.1} parent=5 // pred_region
      // Predicated region
      $region25: #{conv_bn_leakyrelu.1} parent=23 // pred_check
        %p128 = pneg %p29
      $region26: #{conv_bn_leakyrelu.1} parent=23 // pred_check_branch
        %130 = sbr.rel (%p128) target = $region28
      $region27: #{conv_bn_leakyrelu.1} parent=23 // pred_region
        %p131 = scmp.lt.s32.totalorder %s9, 1
        %s132 = scalar_select %p131, %s9, 1
        %s133 = smul.addr %s132, 4
        %s134 = smul.addr %s133, 2
        %s135 = scalar_lea.vmem %s0, %s134
      $region28: #{conv_bn_leakyrelu.1} parent=23 // pred_fallthru
        _
    $region24: #{conv_bn_leakyrelu.1} parent=5 // pred_fallthru
      _
    %p136 = scmp.le.s32.totalorder 1, %s9
    %p137 = scmp.lt.s32.totalorder %s9, 3
    %p138 = pnand %p136, %p137
    %p139 = pneg %p138
    // Predicated region
    $region29: #{conv_bn_leakyrelu.1} parent=5 // pred_check
      _
    $region30: #{conv_bn_leakyrelu.1} parent=5 // pred_check_branch
      %141 = sbr.rel (%p138) target = $region32
    $region31: #{conv_bn_leakyrelu.1} parent=5 // pred_region
      %s142 = ssub.s32 %s9, 1
      %p143 = scmp.lt.s32.totalorder %s14, 1
      %s144 = scalar_select %p143, %s14, 1
      %s145 = smul.addr %s144, 4
      %s146 = smul.addr %s145, 2
      %s147 = scalar_lea.vmem %s0, %s146
      %p148 = pneg %p35
      %p149 = pneg %p32
      %p150 = pneg %p56
      %p151 = pneg %p53
      %p152 = pneg %p77
      %p153 = pneg %p74
      %p154 = pneg %p103
      %p155 = pneg %p100
      %p156 = scmp.lt.s32.totalorder %s14, 1
      %s157 = scalar_select %p156, %s14, 1
      %s158 = smul.addr %s157, 3
      %s159 = smul.addr %s158, 4
      %s160 = scalar_lea.vmem %s3, %s159
      %p161 = scmp.lt.s32.totalorder %s14, 1
      %s162 = scalar_select %p161, %s14, 1
      %s163 = smul.addr %s162, 4
      %s164 = smul.addr %s163, 2
      %s165 = scalar_lea.vmem %s0, %s164
      %p166 = scmp.lt.s32.totalorder %s14, 1
      %s167 = scalar_select %p166, %s14, 1
      %s168 = smul.addr %s167, 3
      %s169 = smul.addr %s168, 4
      %s170 = scalar_lea.vmem %s3, %s169
      %v172 = vld [vmem:[%s165] sm:$0x3f]
      %v173 = vld [vmem:[%s1] sm:$0xf]
      %v174 = vld [vmem:[%s165] sm:$0xff]
      %v176 = vunpack.c.l.b16 %v173
      %v177 = vpack.c.b16 %v176, %v176
      %178 = vrot.lane.b32.xlu0 %v177, 124
      %v179 = vpop.permute.xlu0 %178
      %v181 = vcombine.high %v174, %v174
      %v183 = vunpack.c.l.s4 1983009808
      %v184 = vunpack.c.0.s8 %v183
      %v185 = vlaneseq
      %v186 = vshrl.u32 %v185, 7
      %v187 = vsub.s32 %v184, %v186
      %v188 = vrot.slane %v174, %v187
      %v190 = vunpack.c.l.s4 1983009808
      %v191 = vunpack.c.0.s8 %v190
      %v192 = vlaneseq
      %v193 = vshrl.u32 %v192, 7
      %v194 = vsub.s32 %v191, %v193
      %v195 = vrot.slane %v181, %v194
      %v196 = vcombine.high %v188, %v188
      %v197 = vcombine.high %v195, %v195
      %198 = vrot.lane.b32.xlu0 %v188, 127
      %v199 = vpop.permute.xlu0 %198
      %200 = vrot.lane.b32.xlu0 %v196, 127
      %v201 = vpop.permute.xlu0 %200
      %202 = vrot.lane.b32.xlu0 %v195, 127
      %v203 = vpop.permute.xlu0 %202
      %204 = vrot.lane.b32.xlu0 %v197, 127
      %v205 = vpop.permute.xlu0 %204
      %vm206 = vcmask 1039360
      %v207 = vsel %vm206, %v199, %v201
      %v208 = vsel %vm206, %v201, %v203
      %v209 = vsel %vm206, %v203, %v205
      %vm210 = vcmask 31744
      %v212 = vsel %vm210, %v179, 0
      %vm214 = vcmask 1041408
      %v216 = vsel %vm214, %v207, 0
      %v219 = vsel %vm214, %v208, 0
      %v222 = vsel %vm214, %v209, 0
      %224 = vmatprep.subr.bf16.mxu0 0
      %225 = vmatpush1.bf16.msra.mxu0 0
      %226 = vmatprep.subr.bf16.mxu0 0
      %227 = vmatpush1.bf16.msra.mxu0 0
      %228 = vmatprep.subr.bf16.mxu0 0
      %229 = vmatpush1.bf16.msra.mxu0 0
      %230 = vmatprep.subr.bf16.mxu0 0
      %231 = vmatpush1.bf16.msra.mxu0 0
      %232 = vmatprep.subr.bf16.mxu0 0
      %233 = vmatpush1.bf16.msra.mxu0 0
      %234 = vmatprep.subr.bf16.mxu0 0
      %235 = vmatpush1.bf16.msra.mxu0 0
      %236 = vmatprep.subr.bf16.mxu0 0
      %237 = vmatpush1.bf16.msra.mxu0 0
      %238 = vmatprep.subr.bf16.mxu0 %v219
      %239 = vmatpush1.bf16.msra.mxu0 %v216
      %240 = vmatprep.subr.bf16.mxu0 0
      %241 = vmatpush2.bf16.msra.mxu0 0
      %242 = vmatprep.subr.bf16.mxu0 0
      %243 = vmatpush2.bf16.msra.mxu0 0
      %244 = vmatprep.subr.bf16.mxu0 0
      %245 = vmatpush2.bf16.msra.mxu0 0
      %246 = vmatprep.subr.bf16.mxu0 0
      %247 = vmatpush2.bf16.msra.mxu0 0
      %248 = vmatprep.subr.bf16.mxu0 0
      %249 = vmatpush2.bf16.msra.mxu0 0
      %250 = vmatprep.subr.bf16.mxu0 0
      %251 = vmatpush2.bf16.msra.mxu0 0
      %252 = vmatprep.subr.bf16.mxu0 0
      %253 = vmatpush2.bf16.msra.mxu0 0
      %254 = vmatprep.subr.bf16.mxu0 0
      %255 = vmatpush2.bf16.msra.mxu0 0
      %256 = vmatprep.mubr.bf16.mxu0 0
      %257 = vmatmul.mubr.bf16.gmra.mxu0 %v212
      %v258 = vpop.f32.mrf.mxu0
      %v259 = vadd.f32 0.0, %v258
      %v260 = vpop.f32.mrf.mxu0
      %v261 = vadd.f32 0.0, %v260
      %v262 = vpop.f32.mrf.mxu0
      %v263 = vpop.f32.mrf.mxu0
      %264 = vdwg.mxu0
      %265 = vmatprep.subr.bf16.mxu0 0
      %266 = vmatpush1.bf16.msra.mxu0 0
      %267 = vmatprep.subr.bf16.mxu0 0
      %268 = vmatpush1.bf16.msra.mxu0 0
      %269 = vmatprep.subr.bf16.mxu0 0
      %270 = vmatpush1.bf16.msra.mxu0 0
      %271 = vmatprep.subr.bf16.mxu0 0
      %272 = vmatpush1.bf16.msra.mxu0 0
      %273 = vmatprep.subr.bf16.mxu0 0
      %274 = vmatpush1.bf16.msra.mxu0 0
      %275 = vmatprep.subr.bf16.mxu0 0
      %276 = vmatpush1.bf16.msra.mxu0 0
      %277 = vmatprep.subr.bf16.mxu0 0
      %278 = vmatpush1.bf16.msra.mxu0 0
      %279 = vmatprep.subr.bf16.mxu0 0
      %280 = vmatpush1.bf16.msra.mxu0 %v222
      %281 = vmatprep.subr.bf16.mxu0 0
      %282 = vmatpush2.bf16.msra.mxu0 0
      %283 = vmatprep.subr.bf16.mxu0 0
      %284 = vmatpush2.bf16.msra.mxu0 0
      %285 = vmatprep.subr.bf16.mxu0 0
      %286 = vmatpush2.bf16.msra.mxu0 0
      %287 = vmatprep.subr.bf16.mxu0 0
      %288 = vmatpush2.bf16.msra.mxu0 0
      %289 = vmatprep.subr.bf16.mxu0 0
      %290 = vmatpush2.bf16.msra.mxu0 0
      %291 = vmatprep.subr.bf16.mxu0 0
      %292 = vmatpush2.bf16.msra.mxu0 0
      %293 = vmatprep.subr.bf16.mxu0 0
      %294 = vmatpush2.bf16.msra.mxu0 0
      %295 = vmatprep.subr.bf16.mxu0 0
      %296 = vmatpush2.bf16.msra.mxu0 0
      %297 = vmatprep.mubr.bf16.mxu0 0
      %298 = vmatmul.mubr.bf16.gmra.mxu0 %v212
      %v299 = vpop.f32.mrf.mxu0
      %v300 = vadd.f32 0.0, %v299
      %v301 = vpop.f32.mrf.mxu0
      %v302 = vpop.f32.mrf.mxu0
      %v303 = vpop.f32.mrf.mxu0
      %304 = vdwg.mxu0
      %v306 = vcombine.high %v172, %v172
      %v308 = vunpack.c.l.s4 1983009808
      %v309 = vunpack.c.0.s8 %v308
      %v310 = vlaneseq
      %v311 = vshrl.u32 %v310, 7
      %v312 = vsub.s32 %v309, %v311
      %v313 = vrot.slane %v172, %v312
      %v315 = vunpack.c.l.s4 1983009808
      %v316 = vunpack.c.0.s8 %v315
      %v317 = vlaneseq
      %v318 = vshrl.u32 %v317, 7
      %v319 = vsub.s32 %v316, %v318
      %v320 = vrot.slane %v306, %v319
      %v321 = vcombine.high %v313, %v313
      %v323 = vsel %vm210, %v173, 0
      %v326 = vsel %vm214, %v313, 0
      %v329 = vsel %vm214, %v321, 0
      %v332 = vsel %vm214, %v320, 0
      %334 = vmatprep.subr.bf16.mxu0 0
      %335 = vmatpush1.bf16.msra.mxu0 0
      %336 = vmatprep.subr.bf16.mxu0 0
      %337 = vmatpush1.bf16.msra.mxu0 0
      %338 = vmatprep.subr.bf16.mxu0 0
      %339 = vmatpush1.bf16.msra.mxu0 0
      %340 = vmatprep.subr.bf16.mxu0 0
      %341 = vmatpush1.bf16.msra.mxu0 0
      %342 = vmatprep.subr.bf16.mxu0 0
      %343 = vmatpush1.bf16.msra.mxu0 0
      %344 = vmatprep.subr.bf16.mxu0 0
      %345 = vmatpush1.bf16.msra.mxu0 0
      %346 = vmatprep.subr.bf16.mxu0 0
      %347 = vmatpush1.bf16.msra.mxu0 0
      %348 = vmatprep.subr.bf16.mxu0 %v329
      %349 = vmatpush1.bf16.msra.mxu0 %v326
      %350 = vmatprep.subr.bf16.mxu0 0
      %351 = vmatpush2.bf16.msra.mxu0 0
      %352 = vmatprep.subr.bf16.mxu0 0
      %353 = vmatpush2.bf16.msra.mxu0 0
      %354 = vmatprep.subr.bf16.mxu0 0
      %355 = vmatpush2.bf16.msra.mxu0 0
      %356 = vmatprep.subr.bf16.mxu0 0
      %357 = vmatpush2.bf16.msra.mxu0 0
      %358 = vmatprep.subr.bf16.mxu0 0
      %359 = vmatpush2.bf16.msra.mxu0 0
      %360 = vmatprep.subr.bf16.mxu0 0
      %361 = vmatpush2.bf16.msra.mxu0 0
      %362 = vmatprep.subr.bf16.mxu0 0
      %363 = vmatpush2.bf16.msra.mxu0 0
      %364 = vmatprep.subr.bf16.mxu0 0
      %365 = vmatpush2.bf16.msra.mxu0 0
      %366 = vmatprep.mubr.bf16.mxu0 0
      %367 = vmatmul.mubr.bf16.gmra.mxu0 %v323
      %v368 = vpop.f32.mrf.mxu0
      %v369 = vadd.f32 %v259, %v368
      %v370 = vpop.f32.mrf.mxu0
      %v371 = vadd.f32 %v261, %v370
      %v372 = vpop.f32.mrf.mxu0
      %v373 = vpop.f32.mrf.mxu0
      %374 = vdwg.mxu0
      %375 = vmatprep.subr.bf16.mxu0 0
      %376 = vmatpush1.bf16.msra.mxu0 0
      %377 = vmatprep.subr.bf16.mxu0 0
      %378 = vmatpush1.bf16.msra.mxu0 0
      %379 = vmatprep.subr.bf16.mxu0 0
      %380 = vmatpush1.bf16.msra.mxu0 0
      %381 = vmatprep.subr.bf16.mxu0 0
      %382 = vmatpush1.bf16.msra.mxu0 0
      %383 = vmatprep.subr.bf16.mxu0 0
      %384 = vmatpush1.bf16.msra.mxu0 0
      %385 = vmatprep.subr.bf16.mxu0 0
      %386 = vmatpush1.bf16.msra.mxu0 0
      %387 = vmatprep.subr.bf16.mxu0 0
      %388 = vmatpush1.bf16.msra.mxu0 0
      %389 = vmatprep.subr.bf16.mxu0 0
      %390 = vmatpush1.bf16.msra.mxu0 %v332
      %391 = vmatprep.subr.bf16.mxu0 0
      %392 = vmatpush2.bf16.msra.mxu0 0
      %393 = vmatprep.subr.bf16.mxu0 0
      %394 = vmatpush2.bf16.msra.mxu0 0
      %395 = vmatprep.subr.bf16.mxu0 0
      %396 = vmatpush2.bf16.msra.mxu0 0
      %397 = vmatprep.subr.bf16.mxu0 0
      %398 = vmatpush2.bf16.msra.mxu0 0
      %399 = vmatprep.subr.bf16.mxu0 0
      %400 = vmatpush2.bf16.msra.mxu0 0
      %401 = vmatprep.subr.bf16.mxu0 0
      %402 = vmatpush2.bf16.msra.mxu0 0
      %403 = vmatprep.subr.bf16.mxu0 0
      %404 = vmatpush2.bf16.msra.mxu0 0
      %405 = vmatprep.subr.bf16.mxu0 0
      %406 = vmatpush2.bf16.msra.mxu0 0
      %407 = vmatprep.mubr.bf16.mxu0 0
      %408 = vmatmul.mubr.bf16.gmra.mxu0 %v323
      %v409 = vpop.f32.mrf.mxu0
      %v410 = vadd.f32 %v300, %v409
      %v411 = vpop.f32.mrf.mxu0
      %v412 = vpop.f32.mrf.mxu0
      %v413 = vpop.f32.mrf.mxu0
      %414 = vdwg.mxu0
      %v415 = vld [vmem:[%s165] sm:$0xff]
      %v416 = vld [vmem:[%s1] sm:$0xf]
      %v418 = vunpack.c.l.b16 %v416
      %v419 = vpack.c.b16 %v418, %v418
      %420 = vrot.lane.b32.xlu0 %v419, 120
      %v421 = vpop.permute.xlu0 %420
      %v423 = vcombine.high %v415, %v415
      %v425 = vunpack.c.l.s4 1983009808
      %v426 = vunpack.c.0.s8 %v425
      %v427 = vlaneseq
      %v428 = vshrl.u32 %v427, 7
      %v429 = vsub.s32 %v426, %v428
      %v430 = vrot.slane %v415, %v429
      %v432 = vunpack.c.l.s4 1983009808
      %v433 = vunpack.c.0.s8 %v432
      %v434 = vlaneseq
      %v435 = vshrl.u32 %v434, 7
      %v436 = vsub.s32 %v433, %v435
      %v437 = vrot.slane %v423, %v436
      %v438 = vcombine.high %v430, %v430
      %v439 = vcombine.high %v437, %v437
      %440 = vrot.lane.b32.xlu0 %v430, 126
      %v441 = vpop.permute.xlu0 %440
      %442 = vrot.lane.b32.xlu0 %v438, 126
      %v443 = vpop.permute.xlu0 %442
      %444 = vrot.lane.b32.xlu0 %v437, 126
      %v445 = vpop.permute.xlu0 %444
      %446 = vrot.lane.b32.xlu0 %v439, 126
      %v447 = vpop.permute.xlu0 %446
      %vm448 = vcmask 1031168
      %v449 = vsel %vm448, %v441, %v443
      %v450 = vsel %vm448, %v443, %v445
      %v451 = vsel %vm448, %v445, %v447
      %v453 = vsel %vm210, %v421, 0
      %v456 = vsel %vm214, %v449, 0
      %v459 = vsel %vm214, %v450, 0
      %v462 = vsel %vm214, %v451, 0
      %464 = vmatprep.subr.bf16.mxu0 0
      %465 = vmatpush1.bf16.msra.mxu0 0
      %466 = vmatprep.subr.bf16.mxu0 0
      %467 = vmatpush1.bf16.msra.mxu0 0
      %468 = vmatprep.subr.bf16.mxu0 0
      %469 = vmatpush1.bf16.msra.mxu0 0
      %470 = vmatprep.subr.bf16.mxu0 0
      %471 = vmatpush1.bf16.msra.mxu0 0
      %472 = vmatprep.subr.bf16.mxu0 0
      %473 = vmatpush1.bf16.msra.mxu0 0
      %474 = vmatprep.subr.bf16.mxu0 0
      %475 = vmatpush1.bf16.msra.mxu0 0
      %476 = vmatprep.subr.bf16.mxu0 0
      %477 = vmatpush1.bf16.msra.mxu0 0
      %478 = vmatprep.subr.bf16.mxu0 %v459
      %479 = vmatpush1.bf16.msra.mxu0 %v456
      %480 = vmatprep.subr.bf16.mxu0 0
      %481 = vmatpush2.bf16.msra.mxu0 0
      %482 = vmatprep.subr.bf16.mxu0 0
      %483 = vmatpush2.bf16.msra.mxu0 0
      %484 = vmatprep.subr.bf16.mxu0 0
      %485 = vmatpush2.bf16.msra.mxu0 0
      %486 = vmatprep.subr.bf16.mxu0 0
      %487 = vmatpush2.bf16.msra.mxu0 0
      %488 = vmatprep.subr.bf16.mxu0 0
      %489 = vmatpush2.bf16.msra.mxu0 0
      %490 = vmatprep.subr.bf16.mxu0 0
      %491 = vmatpush2.bf16.msra.mxu0 0
      %492 = vmatprep.subr.bf16.mxu0 0
      %493 = vmatpush2.bf16.msra.mxu0 0
      %494 = vmatprep.subr.bf16.mxu0 0
      %495 = vmatpush2.bf16.msra.mxu0 0
      %496 = vmatprep.mubr.bf16.mxu0 0
      %497 = vmatmul.mubr.bf16.gmra.mxu0 %v453
      %v498 = vpop.f32.mrf.mxu0
      %v499 = vadd.f32 0.0, %v498
      %v500 = vpop.f32.mrf.mxu0
      %v501 = vadd.f32 0.0, %v500
      %v502 = vpop.f32.mrf.mxu0
      %v503 = vpop.f32.mrf.mxu0
      %504 = vdwg.mxu0
      %505 = vmatprep.subr.bf16.mxu0 0
      %506 = vmatpush1.bf16.msra.mxu0 0
      %507 = vmatprep.subr.bf16.mxu0 0
      %508 = vmatpush1.bf16.msra.mxu0 0
      %509 = vmatprep.subr.bf16.mxu0 0
      %510 = vmatpush1.bf16.msra.mxu0 0
      %511 = vmatprep.subr.bf16.mxu0 0
      %512 = vmatpush1.bf16.msra.mxu0 0
      %513 = vmatprep.subr.bf16.mxu0 0
      %514 = vmatpush1.bf16.msra.mxu0 0
      %515 = vmatprep.subr.bf16.mxu0 0
      %516 = vmatpush1.bf16.msra.mxu0 0
      %517 = vmatprep.subr.bf16.mxu0 0
      %518 = vmatpush1.bf16.msra.mxu0 0
      %519 = vmatprep.subr.bf16.mxu0 0
      %520 = vmatpush1.bf16.msra.mxu0 %v462
      %521 = vmatprep.subr.bf16.mxu0 0
      %522 = vmatpush2.bf16.msra.mxu0 0
      %523 = vmatprep.subr.bf16.mxu0 0
      %524 = vmatpush2.bf16.msra.mxu0 0
      %525 = vmatprep.subr.bf16.mxu0 0
      %526 = vmatpush2.bf16.msra.mxu0 0
      %527 = vmatprep.subr.bf16.mxu0 0
      %528 = vmatpush2.bf16.msra.mxu0 0
      %529 = vmatprep.subr.bf16.mxu0 0
      %530 = vmatpush2.bf16.msra.mxu0 0
      %531 = vmatprep.subr.bf16.mxu0 0
      %532 = vmatpush2.bf16.msra.mxu0 0
      %533 = vmatprep.subr.bf16.mxu0 0
      %534 = vmatpush2.bf16.msra.mxu0 0
      %535 = vmatprep.subr.bf16.mxu0 0
      %536 = vmatpush2.bf16.msra.mxu0 0
      %537 = vmatprep.mubr.bf16.mxu0 0
      %538 = vmatmul.mubr.bf16.gmra.mxu0 %v453
      %v539 = vpop.f32.mrf.mxu0
      %v540 = vadd.f32 0.0, %v539
      %v541 = vpop.f32.mrf.mxu0
      %v542 = vpop.f32.mrf.mxu0
      %v543 = vpop.f32.mrf.mxu0
      %544 = vdwg.mxu0
      %v545 = vadd.f32 %v369, %v499
      %v546 = vadd.f32 %v371, %v501
      %v547 = vadd.f32 %v410, %v540
      %v548 = vld [vmem:[%s165] sm:$0xff]
      %v549 = vld [vmem:[%s1] sm:$0xf]
      %v551 = vunpack.c.l.b16 %v549
      %v552 = vpack.c.b16 %v551, %v551
      %553 = vrot.lane.b32.xlu0 %v552, 116
      %v554 = vpop.permute.xlu0 %553
      %v556 = vcombine.high %v548, %v548
      %v558 = vunpack.c.l.s4 1983009808
      %v559 = vunpack.c.0.s8 %v558
      %v560 = vlaneseq
      %v561 = vshrl.u32 %v560, 7
      %v562 = vsub.s32 %v559, %v561
      %v563 = vrot.slane %v548, %v562
      %v565 = vunpack.c.l.s4 1983009808
      %v566 = vunpack.c.0.s8 %v565
      %v567 = vlaneseq
      %v568 = vshrl.u32 %v567, 7
      %v569 = vsub.s32 %v566, %v568
      %v570 = vrot.slane %v556, %v569
      %v571 = vcombine.high %v563, %v563
      %v572 = vcombine.high %v570, %v570
      %573 = vrot.lane.b32.xlu0 %v563, 110
      %v574 = vpop.permute.xlu0 %573
      %575 = vrot.lane.b32.xlu0 %v571, 110
      %v576 = vpop.permute.xlu0 %575
      %577 = vrot.lane.b32.xlu0 %v570, 110
      %v578 = vpop.permute.xlu0 %577
      %579 = vrot.lane.b32.xlu0 %v572, 110
      %v580 = vpop.permute.xlu0 %579
      %vm581 = vcmask 900096
      %v582 = vsel %vm581, %v574, %v576
      %v583 = vsel %vm581, %v576, %v578
      %v584 = vsel %vm581, %v578, %v580
      %v586 = vsel %vm210, %v554, 0
      %v589 = vsel %vm214, %v582, 0
      %v592 = vsel %vm214, %v583, 0
      %v595 = vsel %vm214, %v584, 0
      %597 = vmatprep.subr.bf16.mxu0 0
      %598 = vmatpush1.bf16.msra.mxu0 0
      %599 = vmatprep.subr.bf16.mxu0 0
      %600 = vmatpush1.bf16.msra.mxu0 0
      %601 = vmatprep.subr.bf16.mxu0 0
      %602 = vmatpush1.bf16.msra.mxu0 0
      %603 = vmatprep.subr.bf16.mxu0 0
      %604 = vmatpush1.bf16.msra.mxu0 0
      %605 = vmatprep.subr.bf16.mxu0 0
      %606 = vmatpush1.bf16.msra.mxu0 0
      %607 = vmatprep.subr.bf16.mxu0 0
      %608 = vmatpush1.bf16.msra.mxu0 0
      %609 = vmatprep.subr.bf16.mxu0 0
      %610 = vmatpush1.bf16.msra.mxu0 0
      %611 = vmatprep.subr.bf16.mxu0 %v592
      %612 = vmatpush1.bf16.msra.mxu0 %v589
      %613 = vmatprep.subr.bf16.mxu0 0
      %614 = vmatpush2.bf16.msra.mxu0 0
      %615 = vmatprep.subr.bf16.mxu0 0
      %616 = vmatpush2.bf16.msra.mxu0 0
      %617 = vmatprep.subr.bf16.mxu0 0
      %618 = vmatpush2.bf16.msra.mxu0 0
      %619 = vmatprep.subr.bf16.mxu0 0
      %620 = vmatpush2.bf16.msra.mxu0 0
      %621 = vmatprep.subr.bf16.mxu0 0
      %622 = vmatpush2.bf16.msra.mxu0 0
      %623 = vmatprep.subr.bf16.mxu0 0
      %624 = vmatpush2.bf16.msra.mxu0 0
      %625 = vmatprep.subr.bf16.mxu0 0
      %626 = vmatpush2.bf16.msra.mxu0 0
      %627 = vmatprep.subr.bf16.mxu0 0
      %628 = vmatpush2.bf16.msra.mxu0 0
      %629 = vmatprep.mubr.bf16.mxu0 0
      %630 = vmatmul.mubr.bf16.gmra.mxu0 %v586
      %v631 = vpop.f32.mrf.mxu0
      %v632 = vadd.f32 0.0, %v631
      %v633 = vpop.f32.mrf.mxu0
      %v634 = vadd.f32 0.0, %v633
      %v635 = vpop.f32.mrf.mxu0
      %v636 = vpop.f32.mrf.mxu0
      %637 = vdwg.mxu0
      %638 = vmatprep.subr.bf16.mxu0 0
      %639 = vmatpush1.bf16.msra.mxu0 0
      %640 = vmatprep.subr.bf16.mxu0 0
      %641 = vmatpush1.bf16.msra.mxu0 0
      %642 = vmatprep.subr.bf16.mxu0 0
      %643 = vmatpush1.bf16.msra.mxu0 0
      %644 = vmatprep.subr.bf16.mxu0 0
      %645 = vmatpush1.bf16.msra.mxu0 0
      %646 = vmatprep.subr.bf16.mxu0 0
      %647 = vmatpush1.bf16.msra.mxu0 0
      %648 = vmatprep.subr.bf16.mxu0 0
      %649 = vmatpush1.bf16.msra.mxu0 0
      %650 = vmatprep.subr.bf16.mxu0 0
      %651 = vmatpush1.bf16.msra.mxu0 0
      %652 = vmatprep.subr.bf16.mxu0 0
      %653 = vmatpush1.bf16.msra.mxu0 %v595
      %654 = vmatprep.subr.bf16.mxu0 0
      %655 = vmatpush2.bf16.msra.mxu0 0
      %656 = vmatprep.subr.bf16.mxu0 0
      %657 = vmatpush2.bf16.msra.mxu0 0
      %658 = vmatprep.subr.bf16.mxu0 0
      %659 = vmatpush2.bf16.msra.mxu0 0
      %660 = vmatprep.subr.bf16.mxu0 0
      %661 = vmatpush2.bf16.msra.mxu0 0
      %662 = vmatprep.subr.bf16.mxu0 0
      %663 = vmatpush2.bf16.msra.mxu0 0
      %664 = vmatprep.subr.bf16.mxu0 0
      %665 = vmatpush2.bf16.msra.mxu0 0
      %666 = vmatprep.subr.bf16.mxu0 0
      %667 = vmatpush2.bf16.msra.mxu0 0
      %668 = vmatprep.subr.bf16.mxu0 0
      %669 = vmatpush2.bf16.msra.mxu0 0
      %670 = vmatprep.mubr.bf16.mxu0 0
      %671 = vmatmul.mubr.bf16.gmra.mxu0 %v586
      %v672 = vpop.f32.mrf.mxu0
      %v673 = vadd.f32 0.0, %v672
      %v674 = vpop.f32.mrf.mxu0
      %v675 = vpop.f32.mrf.mxu0
      %v676 = vpop.f32.mrf.mxu0
      %677 = vdwg.mxu0
      %v678 = vadd.f32 %v545, %v632
      %v679 = vadd.f32 %v546, %v634
      %v680 = vadd.f32 %v547, %v673
      %v681 = vld [vmem:[%s165] sm:$0xff]
      %v682 = vld [vmem:[%s1] sm:$0xf]
      %v684 = vunpack.c.l.b16 %v682
      %v685 = vpack.c.b16 %v684, %v684
      %686 = vrot.lane.b32.xlu0 %v685, 112
      %v687 = vpop.permute.xlu0 %686
      %v689 = vcombine.high %v681, %v681
      %v691 = vunpack.c.l.s4 1983009808
      %v692 = vunpack.c.0.s8 %v691
      %v693 = vlaneseq
      %v694 = vshrl.u32 %v693, 7
      %v695 = vsub.s32 %v692, %v694
      %v696 = vrot.slane %v681, %v695
      %v698 = vunpack.c.l.s4 1983009808
      %v699 = vunpack.c.0.s8 %v698
      %v700 = vlaneseq
      %v701 = vshrl.u32 %v700, 7
      %v702 = vsub.s32 %v699, %v701
      %v703 = vrot.slane %v689, %v702
      %v704 = vcombine.high %v696, %v696
      %v705 = vcombine.high %v703, %v703
      %706 = vrot.lane.b32.xlu0 %v696, 109
      %v707 = vpop.permute.xlu0 %706
      %708 = vrot.lane.b32.xlu0 %v704, 109
      %v709 = vpop.permute.xlu0 %708
      %710 = vrot.lane.b32.xlu0 %v703, 109
      %v711 = vpop.permute.xlu0 %710
      %712 = vrot.lane.b32.xlu0 %v705, 109
      %v713 = vpop.permute.xlu0 %712
      %vm714 = vcmask 891904
      %v715 = vsel %vm714, %v707, %v709
      %v716 = vsel %vm714, %v709, %v711
      %v717 = vsel %vm714, %v711, %v713
      %v719 = vsel %vm210, %v687, 0
      %v722 = vsel %vm214, %v715, 0
      %v725 = vsel %vm214, %v716, 0
      %v728 = vsel %vm214, %v717, 0
      %730 = vmatprep.subr.bf16.mxu0 0
      %731 = vmatpush1.bf16.msra.mxu0 0
      %732 = vmatprep.subr.bf16.mxu0 0
      %733 = vmatpush1.bf16.msra.mxu0 0
      %734 = vmatprep.subr.bf16.mxu0 0
      %735 = vmatpush1.bf16.msra.mxu0 0
      %736 = vmatprep.subr.bf16.mxu0 0
      %737 = vmatpush1.bf16.msra.mxu0 0
      %738 = vmatprep.subr.bf16.mxu0 0
      %739 = vmatpush1.bf16.msra.mxu0 0
      %740 = vmatprep.subr.bf16.mxu0 0
      %741 = vmatpush1.bf16.msra.mxu0 0
      %742 = vmatprep.subr.bf16.mxu0 0
      %743 = vmatpush1.bf16.msra.mxu0 0
      %744 = vmatprep.subr.bf16.mxu0 %v725
      %745 = vmatpush1.bf16.msra.mxu0 %v722
      %746 = vmatprep.subr.bf16.mxu0 0
      %747 = vmatpush2.bf16.msra.mxu0 0
      %748 = vmatprep.subr.bf16.mxu0 0
      %749 = vmatpush2.bf16.msra.mxu0 0
      %750 = vmatprep.subr.bf16.mxu0 0
      %751 = vmatpush2.bf16.msra.mxu0 0
      %752 = vmatprep.subr.bf16.mxu0 0
      %753 = vmatpush2.bf16.msra.mxu0 0
      %754 = vmatprep.subr.bf16.mxu0 0
      %755 = vmatpush2.bf16.msra.mxu0 0
      %756 = vmatprep.subr.bf16.mxu0 0
      %757 = vmatpush2.bf16.msra.mxu0 0
      %758 = vmatprep.subr.bf16.mxu0 0
      %759 = vmatpush2.bf16.msra.mxu0 0
      %760 = vmatprep.subr.bf16.mxu0 0
      %761 = vmatpush2.bf16.msra.mxu0 0
      %762 = vmatprep.mubr.bf16.mxu0 0
      %763 = vmatmul.mubr.bf16.gmra.mxu0 %v719
      %v764 = vpop.f32.mrf.mxu0
      %v765 = vadd.f32 0.0, %v764
      %v766 = vpop.f32.mrf.mxu0
      %v767 = vadd.f32 0.0, %v766
      %v768 = vpop.f32.mrf.mxu0
      %v769 = vpop.f32.mrf.mxu0
      %770 = vdwg.mxu0
      %771 = vmatprep.subr.bf16.mxu0 0
      %772 = vmatpush1.bf16.msra.mxu0 0
      %773 = vmatprep.subr.bf16.mxu0 0
      %774 = vmatpush1.bf16.msra.mxu0 0
      %775 = vmatprep.subr.bf16.mxu0 0
      %776 = vmatpush1.bf16.msra.mxu0 0
      %777 = vmatprep.subr.bf16.mxu0 0
      %778 = vmatpush1.bf16.msra.mxu0 0
      %779 = vmatprep.subr.bf16.mxu0 0
      %780 = vmatpush1.bf16.msra.mxu0 0
      %781 = vmatprep.subr.bf16.mxu0 0
      %782 = vmatpush1.bf16.msra.mxu0 0
      %783 = vmatprep.subr.bf16.mxu0 0
      %784 = vmatpush1.bf16.msra.mxu0 0
      %785 = vmatprep.subr.bf16.mxu0 0
      %786 = vmatpush1.bf16.msra.mxu0 %v728
      %787 = vmatprep.subr.bf16.mxu0 0
      %788 = vmatpush2.bf16.msra.mxu0 0
      %789 = vmatprep.subr.bf16.mxu0 0
      %790 = vmatpush2.bf16.msra.mxu0 0
      %791 = vmatprep.subr.bf16.mxu0 0
      %792 = vmatpush2.bf16.msra.mxu0 0
      %793 = vmatprep.subr.bf16.mxu0 0
      %794 = vmatpush2.bf16.msra.mxu0 0
      %795 = vmatprep.subr.bf16.mxu0 0
      %796 = vmatpush2.bf16.msra.mxu0 0
      %797 = vmatprep.subr.bf16.mxu0 0
      %798 = vmatpush2.bf16.msra.mxu0 0
      %799 = vmatprep.subr.bf16.mxu0 0
      %800 = vmatpush2.bf16.msra.mxu0 0
      %801 = vmatprep.subr.bf16.mxu0 0
      %802 = vmatpush2.bf16.msra.mxu0 0
      %803 = vmatprep.mubr.bf16.mxu0 0
      %804 = vmatmul.mubr.bf16.gmra.mxu0 %v719
      %v805 = vpop.f32.mrf.mxu0
      %v806 = vadd.f32 0.0, %v805
      %v807 = vpop.f32.mrf.mxu0
      %v808 = vpop.f32.mrf.mxu0
      %v809 = vpop.f32.mrf.mxu0
      %810 = vdwg.mxu0
      %v811 = vadd.f32 %v678, %v765
      %v812 = vadd.f32 %v679, %v767
      %v813 = vadd.f32 %v680, %v806
      %v814 = vld [vmem:[%s165] sm:$0xff]
      %v815 = vld [vmem:[%s1] sm:$0xf]
      %v817 = vunpack.c.l.b16 %v815
      %v818 = vpack.c.b16 %v817, %v817
      %819 = vrot.lane.b32.xlu0 %v818, 108
      %v820 = vpop.permute.xlu0 %819
      %v822 = vcombine.high %v814, %v814
      %v824 = vunpack.c.l.s4 1983009808
      %v825 = vunpack.c.0.s8 %v824
      %v826 = vlaneseq
      %v827 = vshrl.u32 %v826, 7
      %v828 = vsub.s32 %v825, %v827
      %v829 = vrot.slane %v814, %v828
      %v831 = vunpack.c.l.s4 1983009808
      %v832 = vunpack.c.0.s8 %v831
      %v833 = vlaneseq
      %v834 = vshrl.u32 %v833, 7
      %v835 = vsub.s32 %v832, %v834
      %v836 = vrot.slane %v822, %v835
      %v837 = vcombine.high %v829, %v829
      %v838 = vcombine.high %v836, %v836
      %839 = vrot.lane.b32.xlu0 %v829, 108
      %v840 = vpop.permute.xlu0 %839
      %841 = vrot.lane.b32.xlu0 %v837, 108
      %v842 = vpop.permute.xlu0 %841
      %843 = vrot.lane.b32.xlu0 %v836, 108
      %v844 = vpop.permute.xlu0 %843
      %845 = vrot.lane.b32.xlu0 %v838, 108
      %v846 = vpop.permute.xlu0 %845
      %vm847 = vcmask 883712
      %v848 = vsel %vm847, %v840, %v842
      %v849 = vsel %vm847, %v842, %v844
      %v850 = vsel %vm847, %v844, %v846
      %v852 = vsel %vm210, %v820, 0
      %v855 = vsel %vm214, %v848, 0
      %v858 = vsel %vm214, %v849, 0
      %v861 = vsel %vm214, %v850, 0
      %863 = vmatprep.subr.bf16.mxu0 0
      %864 = vmatpush1.bf16.msra.mxu0 0
      %865 = vmatprep.subr.bf16.mxu0 0
      %866 = vmatpush1.bf16.msra.mxu0 0
      %867 = vmatprep.subr.bf16.mxu0 0
      %868 = vmatpush1.bf16.msra.mxu0 0
      %869 = vmatprep.subr.bf16.mxu0 0
      %870 = vmatpush1.bf16.msra.mxu0 0
      %871 = vmatprep.subr.bf16.mxu0 0
      %872 = vmatpush1.bf16.msra.mxu0 0
      %873 = vmatprep.subr.bf16.mxu0 0
      %874 = vmatpush1.bf16.msra.mxu0 0
      %875 = vmatprep.subr.bf16.mxu0 0
      %876 = vmatpush1.bf16.msra.mxu0 0
      %877 = vmatprep.subr.bf16.mxu0 %v858
      %878 = vmatpush1.bf16.msra.mxu0 %v855
      %879 = vmatprep.subr.bf16.mxu0 0
      %880 = vmatpush2.bf16.msra.mxu0 0
      %881 = vmatprep.subr.bf16.mxu0 0
      %882 = vmatpush2.bf16.msra.mxu0 0
      %883 = vmatprep.subr.bf16.mxu0 0
      %884 = vmatpush2.bf16.msra.mxu0 0
      %885 = vmatprep.subr.bf16.mxu0 0
      %886 = vmatpush2.bf16.msra.mxu0 0
      %887 = vmatprep.subr.bf16.mxu0 0
      %888 = vmatpush2.bf16.msra.mxu0 0
      %889 = vmatprep.subr.bf16.mxu0 0
      %890 = vmatpush2.bf16.msra.mxu0 0
      %891 = vmatprep.subr.bf16.mxu0 0
      %892 = vmatpush2.bf16.msra.mxu0 0
      %893 = vmatprep.subr.bf16.mxu0 0
      %894 = vmatpush2.bf16.msra.mxu0 0
      %895 = vmatprep.mubr.bf16.mxu0 0
      %896 = vmatmul.mubr.bf16.gmra.mxu0 %v852
      %v897 = vpop.f32.mrf.mxu0
      %v898 = vadd.f32 0.0, %v897
      %v899 = vpop.f32.mrf.mxu0
      %v900 = vadd.f32 0.0, %v899
      %v901 = vpop.f32.mrf.mxu0
      %v902 = vpop.f32.mrf.mxu0
      %903 = vdwg.mxu0
      %904 = vmatprep.subr.bf16.mxu0 0
      %905 = vmatpush1.bf16.msra.mxu0 0
      %906 = vmatprep.subr.bf16.mxu0 0
      %907 = vmatpush1.bf16.msra.mxu0 0
      %908 = vmatprep.subr.bf16.mxu0 0
      %909 = vmatpush1.bf16.msra.mxu0 0
      %910 = vmatprep.subr.bf16.mxu0 0
      %911 = vmatpush1.bf16.msra.mxu0 0
      %912 = vmatprep.subr.bf16.mxu0 0
      %913 = vmatpush1.bf16.msra.mxu0 0
      %914 = vmatprep.subr.bf16.mxu0 0
      %915 = vmatpush1.bf16.msra.mxu0 0
      %916 = vmatprep.subr.bf16.mxu0 0
      %917 = vmatpush1.bf16.msra.mxu0 0
      %918 = vmatprep.subr.bf16.mxu0 0
      %919 = vmatpush1.bf16.msra.mxu0 %v861
      %920 = vmatprep.subr.bf16.mxu0 0
      %921 = vmatpush2.bf16.msra.mxu0 0
      %922 = vmatprep.subr.bf16.mxu0 0
      %923 = vmatpush2.bf16.msra.mxu0 0
      %924 = vmatprep.subr.bf16.mxu0 0
      %925 = vmatpush2.bf16.msra.mxu0 0
      %926 = vmatprep.subr.bf16.mxu0 0
      %927 = vmatpush2.bf16.msra.mxu0 0
      %928 = vmatprep.subr.bf16.mxu0 0
      %929 = vmatpush2.bf16.msra.mxu0 0
      %930 = vmatprep.subr.bf16.mxu0 0
      %931 = vmatpush2.bf16.msra.mxu0 0
      %932 = vmatprep.subr.bf16.mxu0 0
      %933 = vmatpush2.bf16.msra.mxu0 0
      %934 = vmatprep.subr.bf16.mxu0 0
      %935 = vmatpush2.bf16.msra.mxu0 0
      %936 = vmatprep.mubr.bf16.mxu0 0
      %937 = vmatmul.mubr.bf16.gmra.mxu0 %v852
      %v938 = vpop.f32.mrf.mxu0
      %v939 = vadd.f32 0.0, %v938
      %v940 = vpop.f32.mrf.mxu0
      %v941 = vpop.f32.mrf.mxu0
      %v942 = vpop.f32.mrf.mxu0
      %943 = vdwg.mxu0
      %v944 = vadd.f32 %v811, %v898
      %v945 = vadd.f32 %v812, %v900
      %v946 = vadd.f32 %v813, %v939
      %v947 = vld [vmem:[%s165] sm:$0xff]
      %v948 = vld [vmem:[%s1] sm:$0xf]
      %v950 = vunpack.c.l.b16 %v948
      %v951 = vpack.c.b16 %v950, %v950
      %952 = vrot.lane.b32.xlu0 %v951, 104
      %v953 = vpop.permute.xlu0 %952
      %v955 = vcombine.high %v947, %v947
      %v957 = vunpack.c.l.s4 1983009808
      %v958 = vunpack.c.0.s8 %v957
      %v959 = vlaneseq
      %v960 = vshrl.u32 %v959, 7
      %v961 = vsub.s32 %v958, %v960
      %v962 = vrot.slane %v947, %v961
      %v964 = vunpack.c.l.s4 1983009808
      %v965 = vunpack.c.0.s8 %v964
      %v966 = vlaneseq
      %v967 = vshrl.u32 %v966, 7
      %v968 = vsub.s32 %v965, %v967
      %v969 = vrot.slane %v955, %v968
      %v970 = vcombine.high %v962, %v962
      %v971 = vcombine.high %v969, %v969
      %972 = vrot.lane.b32.xlu0 %v962, 92
      %v973 = vpop.permute.xlu0 %972
      %974 = vrot.lane.b32.xlu0 %v970, 92
      %v975 = vpop.permute.xlu0 %974
      %976 = vrot.lane.b32.xlu0 %v969, 92
      %v977 = vpop.permute.xlu0 %976
      %978 = vrot.lane.b32.xlu0 %v971, 92
      %v979 = vpop.permute.xlu0 %978
      %vm980 = vcmask 752640
      %v981 = vsel %vm980, %v973, %v975
      %v982 = vsel %vm980, %v975, %v977
      %v983 = vsel %vm980, %v977, %v979
      %v985 = vsel %vm210, %v953, 0
      %v988 = vsel %vm214, %v981, 0
      %v991 = vsel %vm214, %v982, 0
      %v994 = vsel %vm214, %v983, 0
      %996 = vmatprep.subr.bf16.mxu0 0
      %997 = vmatpush1.bf16.msra.mxu0 0
      %998 = vmatprep.subr.bf16.mxu0 0
      %999 = vmatpush1.bf16.msra.mxu0 0
      %1000 = vmatprep.subr.bf16.mxu0 0
      %1001 = vmatpush1.bf16.msra.mxu0 0
      %1002 = vmatprep.subr.bf16.mxu0 0
      %1003 = vmatpush1.bf16.msra.mxu0 0
      %1004 = vmatprep.subr.bf16.mxu0 0
      %1005 = vmatpush1.bf16.msra.mxu0 0
      %1006 = vmatprep.subr.bf16.mxu0 0
      %1007 = vmatpush1.bf16.msra.mxu0 0
      %1008 = vmatprep.subr.bf16.mxu0 0
      %1009 = vmatpush1.bf16.msra.mxu0 0
      %1010 = vmatprep.subr.bf16.mxu0 %v991
      %1011 = vmatpush1.bf16.msra.mxu0 %v988
      %1012 = vmatprep.subr.bf16.mxu0 0
      %1013 = vmatpush2.bf16.msra.mxu0 0
      %1014 = vmatprep.subr.bf16.mxu0 0
      %1015 = vmatpush2.bf16.msra.mxu0 0
      %1016 = vmatprep.subr.bf16.mxu0 0
      %1017 = vmatpush2.bf16.msra.mxu0 0
      %1018 = vmatprep.subr.bf16.mxu0 0
      %1019 = vmatpush2.bf16.msra.mxu0 0
      %1020 = vmatprep.subr.bf16.mxu0 0
      %1021 = vmatpush2.bf16.msra.mxu0 0
      %1022 = vmatprep.subr.bf16.mxu0 0
      %1023 = vmatpush2.bf16.msra.mxu0 0
      %1024 = vmatprep.subr.bf16.mxu0 0
      %1025 = vmatpush2.bf16.msra.mxu0 0
      %1026 = vmatprep.subr.bf16.mxu0 0
      %1027 = vmatpush2.bf16.msra.mxu0 0
      %1028 = vmatprep.mubr.bf16.mxu0 0
      %1029 = vmatmul.mubr.bf16.gmra.mxu0 %v985
      %v1030 = vpop.f32.mrf.mxu0
      %v1031 = vadd.f32 0.0, %v1030
      %v1032 = vpop.f32.mrf.mxu0
      %v1033 = vadd.f32 0.0, %v1032
      %v1034 = vpop.f32.mrf.mxu0
      %v1035 = vpop.f32.mrf.mxu0
      %1036 = vdwg.mxu0
      %1037 = vmatprep.subr.bf16.mxu0 0
      %1038 = vmatpush1.bf16.msra.mxu0 0
      %1039 = vmatprep.subr.bf16.mxu0 0
      %1040 = vmatpush1.bf16.msra.mxu0 0
      %1041 = vmatprep.subr.bf16.mxu0 0
      %1042 = vmatpush1.bf16.msra.mxu0 0
      %1043 = vmatprep.subr.bf16.mxu0 0
      %1044 = vmatpush1.bf16.msra.mxu0 0
      %1045 = vmatprep.subr.bf16.mxu0 0
      %1046 = vmatpush1.bf16.msra.mxu0 0
      %1047 = vmatprep.subr.bf16.mxu0 0
      %1048 = vmatpush1.bf16.msra.mxu0 0
      %1049 = vmatprep.subr.bf16.mxu0 0
      %1050 = vmatpush1.bf16.msra.mxu0 0
      %1051 = vmatprep.subr.bf16.mxu0 0
      %1052 = vmatpush1.bf16.msra.mxu0 %v994
      %1053 = vmatprep.subr.bf16.mxu0 0
      %1054 = vmatpush2.bf16.msra.mxu0 0
      %1055 = vmatprep.subr.bf16.mxu0 0
      %1056 = vmatpush2.bf16.msra.mxu0 0
      %1057 = vmatprep.subr.bf16.mxu0 0
      %1058 = vmatpush2.bf16.msra.mxu0 0
      %1059 = vmatprep.subr.bf16.mxu0 0
      %1060 = vmatpush2.bf16.msra.mxu0 0
      %1061 = vmatprep.subr.bf16.mxu0 0
      %1062 = vmatpush2.bf16.msra.mxu0 0
      %1063 = vmatprep.subr.bf16.mxu0 0
      %1064 = vmatpush2.bf16.msra.mxu0 0
      %1065 = vmatprep.subr.bf16.mxu0 0
      %1066 = vmatpush2.bf16.msra.mxu0 0
      %1067 = vmatprep.subr.bf16.mxu0 0
      %1068 = vmatpush2.bf16.msra.mxu0 0
      %1069 = vmatprep.mubr.bf16.mxu0 0
      %1070 = vmatmul.mubr.bf16.gmra.mxu0 %v985
      %v1071 = vpop.f32.mrf.mxu0
      %v1072 = vadd.f32 0.0, %v1071
      %v1073 = vpop.f32.mrf.mxu0
      %v1074 = vpop.f32.mrf.mxu0
      %v1075 = vpop.f32.mrf.mxu0
      %1076 = vdwg.mxu0
      %v1077 = vadd.f32 %v944, %v1031
      %v1078 = vadd.f32 %v945, %v1033
      %v1079 = vadd.f32 %v946, %v1072
      %v1080 = vld [vmem:[%s165] sm:$0xff]
      %v1081 = vld [vmem:[%s1] sm:$0xf]
      %v1083 = vunpack.c.l.b16 %v1081
      %v1084 = vpack.c.b16 %v1083, %v1083
      %1085 = vrot.lane.b32.xlu0 %v1084, 100
      %v1086 = vpop.permute.xlu0 %1085
      %v1088 = vcombine.high %v1080, %v1080
      %v1090 = vunpack.c.l.s4 1983009808
      %v1091 = vunpack.c.0.s8 %v1090
      %v1092 = vlaneseq
      %v1093 = vshrl.u32 %v1092, 7
      %v1094 = vsub.s32 %v1091, %v1093
      %v1095 = vrot.slane %v1080, %v1094
      %v1097 = vunpack.c.l.s4 1983009808
      %v1098 = vunpack.c.0.s8 %v1097
      %v1099 = vlaneseq
      %v1100 = vshrl.u32 %v1099, 7
      %v1101 = vsub.s32 %v1098, %v1100
      %v1102 = vrot.slane %v1088, %v1101
      %v1103 = vcombine.high %v1095, %v1095
      %v1104 = vcombine.high %v1102, %v1102
      %1105 = vrot.lane.b32.xlu0 %v1095, 91
      %v1106 = vpop.permute.xlu0 %1105
      %1107 = vrot.lane.b32.xlu0 %v1103, 91
      %v1108 = vpop.permute.xlu0 %1107
      %1109 = vrot.lane.b32.xlu0 %v1102, 91
      %v1110 = vpop.permute.xlu0 %1109
      %1111 = vrot.lane.b32.xlu0 %v1104, 91
      %v1112 = vpop.permute.xlu0 %1111
      %vm1113 = vcmask 744448
      %v1114 = vsel %vm1113, %v1106, %v1108
      %v1115 = vsel %vm1113, %v1108, %v1110
      %v1116 = vsel %vm1113, %v1110, %v1112
      %v1118 = vsel %vm210, %v1086, 0
      %v1121 = vsel %vm214, %v1114, 0
      %v1124 = vsel %vm214, %v1115, 0
      %v1127 = vsel %vm214, %v1116, 0
      %1129 = vmatprep.subr.bf16.mxu0 0
      %1130 = vmatpush1.bf16.msra.mxu0 0
      %1131 = vmatprep.subr.bf16.mxu0 0
      %1132 = vmatpush1.bf16.msra.mxu0 0
      %1133 = vmatprep.subr.bf16.mxu0 0
      %1134 = vmatpush1.bf16.msra.mxu0 0
      %1135 = vmatprep.subr.bf16.mxu0 0
      %1136 = vmatpush1.bf16.msra.mxu0 0
      %1137 = vmatprep.subr.bf16.mxu0 0
      %1138 = vmatpush1.bf16.msra.mxu0 0
      %1139 = vmatprep.subr.bf16.mxu0 0
      %1140 = vmatpush1.bf16.msra.mxu0 0
      %1141 = vmatprep.subr.bf16.mxu0 0
      %1142 = vmatpush1.bf16.msra.mxu0 0
      %1143 = vmatprep.subr.bf16.mxu0 %v1124
      %1144 = vmatpush1.bf16.msra.mxu0 %v1121
      %1145 = vmatprep.subr.bf16.mxu0 0
      %1146 = vmatpush2.bf16.msra.mxu0 0
      %1147 = vmatprep.subr.bf16.mxu0 0
      %1148 = vmatpush2.bf16.msra.mxu0 0
      %1149 = vmatprep.subr.bf16.mxu0 0
      %1150 = vmatpush2.bf16.msra.mxu0 0
      %1151 = vmatprep.subr.bf16.mxu0 0
      %1152 = vmatpush2.bf16.msra.mxu0 0
      %1153 = vmatprep.subr.bf16.mxu0 0
      %1154 = vmatpush2.bf16.msra.mxu0 0
      %1155 = vmatprep.subr.bf16.mxu0 0
      %1156 = vmatpush2.bf16.msra.mxu0 0
      %1157 = vmatprep.subr.bf16.mxu0 0
      %1158 = vmatpush2.bf16.msra.mxu0 0
      %1159 = vmatprep.subr.bf16.mxu0 0
      %1160 = vmatpush2.bf16.msra.mxu0 0
      %1161 = vmatprep.mubr.bf16.mxu0 0
      %1162 = vmatmul.mubr.bf16.gmra.mxu0 %v1118
      %v1163 = vpop.f32.mrf.mxu0
      %v1164 = vadd.f32 0.0, %v1163
      %v1165 = vpop.f32.mrf.mxu0
      %v1166 = vadd.f32 0.0, %v1165
      %v1167 = vpop.f32.mrf.mxu0
      %v1168 = vpop.f32.mrf.mxu0
      %1169 = vdwg.mxu0
      %1170 = vmatprep.subr.bf16.mxu0 0
      %1171 = vmatpush1.bf16.msra.mxu0 0
      %1172 = vmatprep.subr.bf16.mxu0 0
      %1173 = vmatpush1.bf16.msra.mxu0 0
      %1174 = vmatprep.subr.bf16.mxu0 0
      %1175 = vmatpush1.bf16.msra.mxu0 0
      %1176 = vmatprep.subr.bf16.mxu0 0
      %1177 = vmatpush1.bf16.msra.mxu0 0
      %1178 = vmatprep.subr.bf16.mxu0 0
      %1179 = vmatpush1.bf16.msra.mxu0 0
      %1180 = vmatprep.subr.bf16.mxu0 0
      %1181 = vmatpush1.bf16.msra.mxu0 0
      %1182 = vmatprep.subr.bf16.mxu0 0
      %1183 = vmatpush1.bf16.msra.mxu0 0
      %1184 = vmatprep.subr.bf16.mxu0 0
      %1185 = vmatpush1.bf16.msra.mxu0 %v1127
      %1186 = vmatprep.subr.bf16.mxu0 0
      %1187 = vmatpush2.bf16.msra.mxu0 0
      %1188 = vmatprep.subr.bf16.mxu0 0
      %1189 = vmatpush2.bf16.msra.mxu0 0
      %1190 = vmatprep.subr.bf16.mxu0 0
      %1191 = vmatpush2.bf16.msra.mxu0 0
      %1192 = vmatprep.subr.bf16.mxu0 0
      %1193 = vmatpush2.bf16.msra.mxu0 0
      %1194 = vmatprep.subr.bf16.mxu0 0
      %1195 = vmatpush2.bf16.msra.mxu0 0
      %1196 = vmatprep.subr.bf16.mxu0 0
      %1197 = vmatpush2.bf16.msra.mxu0 0
      %1198 = vmatprep.subr.bf16.mxu0 0
      %1199 = vmatpush2.bf16.msra.mxu0 0
      %1200 = vmatprep.subr.bf16.mxu0 0
      %1201 = vmatpush2.bf16.msra.mxu0 0
      %1202 = vmatprep.mubr.bf16.mxu0 0
      %1203 = vmatmul.mubr.bf16.gmra.mxu0 %v1118
      %v1204 = vpop.f32.mrf.mxu0
      %v1205 = vadd.f32 0.0, %v1204
      %v1206 = vpop.f32.mrf.mxu0
      %v1207 = vpop.f32.mrf.mxu0
      %v1208 = vpop.f32.mrf.mxu0
      %1209 = vdwg.mxu0
      %v1210 = vadd.f32 %v1077, %v1164
      %v1211 = vadd.f32 %v1078, %v1166
      %v1212 = vadd.f32 %v1079, %v1205
      %v1213 = vld [vmem:[%s165] sm:$0xff]
      %v1214 = vld [vmem:[%s1] sm:$0xf]
      %v1216 = vunpack.c.l.b16 %v1214
      %v1217 = vpack.c.b16 %v1216, %v1216
      %1218 = vrot.lane.b32.xlu0 %v1217, 96
      %v1219 = vpop.permute.xlu0 %1218
      %v1221 = vcombine.high %v1213, %v1213
      %v1223 = vunpack.c.l.s4 1983009808
      %v1224 = vunpack.c.0.s8 %v1223
      %v1225 = vlaneseq
      %v1226 = vshrl.u32 %v1225, 7
      %v1227 = vsub.s32 %v1224, %v1226
      %v1228 = vrot.slane %v1213, %v1227
      %v1230 = vunpack.c.l.s4 1983009808
      %v1231 = vunpack.c.0.s8 %v1230
      %v1232 = vlaneseq
      %v1233 = vshrl.u32 %v1232, 7
      %v1234 = vsub.s32 %v1231, %v1233
      %v1235 = vrot.slane %v1221, %v1234
      %v1236 = vcombine.high %v1228, %v1228
      %v1237 = vcombine.high %v1235, %v1235
      %1238 = vrot.lane.b32.xlu0 %v1228, 90
      %v1239 = vpop.permute.xlu0 %1238
      %1240 = vrot.lane.b32.xlu0 %v1236, 90
      %v1241 = vpop.permute.xlu0 %1240
      %1242 = vrot.lane.b32.xlu0 %v1235, 90
      %v1243 = vpop.permute.xlu0 %1242
      %1244 = vrot.lane.b32.xlu0 %v1237, 90
      %v1245 = vpop.permute.xlu0 %1244
      %vm1246 = vcmask 736256
      %v1247 = vsel %vm1246, %v1239, %v1241
      %v1248 = vsel %vm1246, %v1241, %v1243
      %v1249 = vsel %vm1246, %v1243, %v1245
      %v1251 = vsel %vm210, %v1219, 0
      %v1254 = vsel %vm214, %v1247, 0
      %v1257 = vsel %vm214, %v1248, 0
      %v1260 = vsel %vm214, %v1249, 0
      %1262 = vmatprep.subr.bf16.mxu0 0
      %1263 = vmatpush1.bf16.msra.mxu0 0
      %1264 = vmatprep.subr.bf16.mxu0 0
      %1265 = vmatpush1.bf16.msra.mxu0 0
      %1266 = vmatprep.subr.bf16.mxu0 0
      %1267 = vmatpush1.bf16.msra.mxu0 0
      %1268 = vmatprep.subr.bf16.mxu0 0
      %1269 = vmatpush1.bf16.msra.mxu0 0
      %1270 = vmatprep.subr.bf16.mxu0 0
      %1271 = vmatpush1.bf16.msra.mxu0 0
      %1272 = vmatprep.subr.bf16.mxu0 0
      %1273 = vmatpush1.bf16.msra.mxu0 0
      %1274 = vmatprep.subr.bf16.mxu0 0
      %1275 = vmatpush1.bf16.msra.mxu0 0
      %1276 = vmatprep.subr.bf16.mxu0 %v1257
      %1277 = vmatpush1.bf16.msra.mxu0 %v1254
      %1278 = vmatprep.subr.bf16.mxu0 0
      %1279 = vmatpush2.bf16.msra.mxu0 0
      %1280 = vmatprep.subr.bf16.mxu0 0
      %1281 = vmatpush2.bf16.msra.mxu0 0
      %1282 = vmatprep.subr.bf16.mxu0 0
      %1283 = vmatpush2.bf16.msra.mxu0 0
      %1284 = vmatprep.subr.bf16.mxu0 0
      %1285 = vmatpush2.bf16.msra.mxu0 0
      %1286 = vmatprep.subr.bf16.mxu0 0
      %1287 = vmatpush2.bf16.msra.mxu0 0
      %1288 = vmatprep.subr.bf16.mxu0 0
      %1289 = vmatpush2.bf16.msra.mxu0 0
      %1290 = vmatprep.subr.bf16.mxu0 0
      %1291 = vmatpush2.bf16.msra.mxu0 0
      %1292 = vmatprep.subr.bf16.mxu0 0
      %1293 = vmatpush2.bf16.msra.mxu0 0
      %1294 = vmatprep.mubr.bf16.mxu0 0
      %1295 = vmatmul.mubr.bf16.gmra.mxu0 %v1251
      %v1296 = vpop.f32.mrf.mxu0
      %v1297 = vadd.f32 0.0, %v1296
      %v1298 = vpop.f32.mrf.mxu0
      %v1299 = vadd.f32 0.0, %v1298
      %v1300 = vpop.f32.mrf.mxu0
      %v1301 = vpop.f32.mrf.mxu0
      %1302 = vdwg.mxu0
      %1303 = vmatprep.subr.bf16.mxu0 0
      %1304 = vmatpush1.bf16.msra.mxu0 0
      %1305 = vmatprep.subr.bf16.mxu0 0
      %1306 = vmatpush1.bf16.msra.mxu0 0
      %1307 = vmatprep.subr.bf16.mxu0 0
      %1308 = vmatpush1.bf16.msra.mxu0 0
      %1309 = vmatprep.subr.bf16.mxu0 0
      %1310 = vmatpush1.bf16.msra.mxu0 0
      %1311 = vmatprep.subr.bf16.mxu0 0
      %1312 = vmatpush1.bf16.msra.mxu0 0
      %1313 = vmatprep.subr.bf16.mxu0 0
      %1314 = vmatpush1.bf16.msra.mxu0 0
      %1315 = vmatprep.subr.bf16.mxu0 0
      %1316 = vmatpush1.bf16.msra.mxu0 0
      %1317 = vmatprep.subr.bf16.mxu0 0
      %1318 = vmatpush1.bf16.msra.mxu0 %v1260
      %1319 = vmatprep.subr.bf16.mxu0 0
      %1320 = vmatpush2.bf16.msra.mxu0 0
      %1321 = vmatprep.subr.bf16.mxu0 0
      %1322 = vmatpush2.bf16.msra.mxu0 0
      %1323 = vmatprep.subr.bf16.mxu0 0
      %1324 = vmatpush2.bf16.msra.mxu0 0
      %1325 = vmatprep.subr.bf16.mxu0 0
      %1326 = vmatpush2.bf16.msra.mxu0 0
      %1327 = vmatprep.subr.bf16.mxu0 0
      %1328 = vmatpush2.bf16.msra.mxu0 0
      %1329 = vmatprep.subr.bf16.mxu0 0
      %1330 = vmatpush2.bf16.msra.mxu0 0
      %1331 = vmatprep.subr.bf16.mxu0 0
      %1332 = vmatpush2.bf16.msra.mxu0 0
      %1333 = vmatprep.subr.bf16.mxu0 0
      %1334 = vmatpush2.bf16.msra.mxu0 0
      %1335 = vmatprep.mubr.bf16.mxu0 0
      %1336 = vmatmul.mubr.bf16.gmra.mxu0 %v1251
      %v1337 = vpop.f32.mrf.mxu0
      %v1338 = vadd.f32 0.0, %v1337
      %v1339 = vpop.f32.mrf.mxu0
      %v1340 = vpop.f32.mrf.mxu0
      %v1341 = vpop.f32.mrf.mxu0
      %1342 = vdwg.mxu0
      %v1343 = vadd.f32 %v1210, %v1297
      %v1344 = vadd.f32 %v1211, %v1299
      %v1345 = vadd.f32 %v1212, %v1338
      %v1346 = vld [vmem:[%s2] sm:$0xff]
      %1348 = vset.pattern.permute.xlu0 0
      %1349 = vperm.xlu0 %1348, %v1346
      %v1350 = vpop.permute.xlu0 %1349
      %v1352 = vadd.f32 %v1343, %v1350
      %v1353 = vadd.f32 %v1344, %v1350
      %v1354 = vadd.f32 %v1345, %v1350
      %vm1355 = vcmp.ge.f32.partialorder %v1352, 0.0
      %vm1356 = vcmp.ge.f32.partialorder %v1353, 0.0
      %vm1357 = vcmp.ge.f32.partialorder %v1354, 0.0
      %v1358 = vmul.f32 %v1352, 0.1
      %v1359 = vmul.f32 %v1353, 0.1
      %v1360 = vmul.f32 %v1354, 0.1
      %v1361 = vsel %vm1355, %v1352, %v1358
      %v1362 = vsel %vm1356, %v1353, %v1359
      %v1363 = vsel %vm1357, %v1354, %v1360
      %v1364 = vpack.c.bf16 %v1361, %v1361
      %v1365 = vpack.c.bf16 %v1362, %v1362
      %v1366 = vpack.c.bf16 %v1363, %v1363
      %v1370 = vunpack.c.l.b16 %v1364
      %v1371 = vunpack.c.l.b16 %v1365
      %v1372 = vunpack.c.l.b16 %v1366
      %v1373 = vpack.c.b16 %v1371, %v1370
      %v1374 = vpack.c.b16 %v1372, %v1372
      %1377 = vst [vmem:[%s170] sm:$0xff] %v1373
      %1378 = vst [vmem:[%s170 + $0x8] sm:$0xf] %v1374
      %p1379 = scmp.lt.s32.totalorder %s14, 1
      %s1380 = scalar_select %p1379, %s14, 1
      %s1381 = smul.addr %s1380, 3
      %s1382 = smul.addr %s1381, 4
      %s1383 = scalar_lea.vmem %s3, %s1382
      // Predicated region
      $region33: #{conv_bn_leakyrelu.1} parent=31 // pred_check
        %p1384 = pneg %p100
      $region34: #{conv_bn_leakyrelu.1} parent=31 // pred_check_branch
        %1386 = sbr.rel (%p1384) target = $region36
      $region35: #{conv_bn_leakyrelu.1} parent=31 // pred_region
        _
      $region36: #{conv_bn_leakyrelu.1} parent=31 // pred_fallthru
        _
    $region32: #{conv_bn_leakyrelu.1} parent=5 // pred_fallthru
      _
    %p1387 = scmp.le.s32.totalorder 2, %s9
    // Predicated region
    $region37: #{conv_bn_leakyrelu.1} parent=5 // pred_check
      %p1388 = pneg %p1387
    $region38: #{conv_bn_leakyrelu.1} parent=5 // pred_check_branch
      %1390 = sbr.rel (%p1388) target = $region40
    $region39: #{conv_bn_leakyrelu.1} parent=5 // pred_region
      %s1391 = ssub.s32 %s9, 2
      // Predicated region
      $region41: #{conv_bn_leakyrelu.1} parent=39 // pred_check
        %p1392 = pneg %p106
      $region42: #{conv_bn_leakyrelu.1} parent=39 // pred_check_branch
        %1394 = sbr.rel (%p1392) target = $region44
      $region43: #{conv_bn_leakyrelu.1} parent=39 // pred_region
        %p1395 = scmp.lt.s32.totalorder %s15, 1
        %s1396 = scalar_select %p1395, %s15, 1
        %s1397 = smul.addr %s1396, 3
        %s1398 = smul.addr %s1397, 4
        %s1399 = scalar_lea.vmem %s3, %s1398
      $region44: #{conv_bn_leakyrelu.1} parent=39 // pred_fallthru
        _
    $region40: #{conv_bn_leakyrelu.1} parent=5 // pred_fallthru
      _
  $region6: #{conv_bn_leakyrelu.1} parent=0 // loop_footer
    %s13 = sadd.s32 1, %s9
  $region7: #{conv_bn_leakyrelu.1} parent=0 // loop_footer_branch
    %8 = sbr.rel target = $region3
  $region8: #{conv_bn_leakyrelu.1} parent=0 // loop_exit
    _

</llo_original>
